<compile_context>
chip_gen: v6e
topology: v6e:2x2x1
jax: 0.10.0
libtpu: 0.0.40
codegen_flags: <defaults>
</compile_context>

<pallas_src>
import math

import jax
import jax.numpy as jnp
from jax.experimental import pallas as pl
from jax.experimental.pallas import tpu as pltpu


# ---------------------------------------------------------------------------
# Kernel
# ---------------------------------------------------------------------------
def agent_embedding_kernel(obs_ref, act_ref, h0_ref,
                           w1o_ref, w1a_ref, wg_ref, b_ref, w2_ref,
                           y_ref, hT_ref, h_scr):
    # grid = (batch_blocks, T); axis 1 is the sequential time axis.
    t = pl.program_id(1)

    @pl.when(t == 0)
    def _():
        h_scr[...] = h0_ref[...]            # initialize carried hidden state

    h = h_scr[...]                          # (TB, E) previous hidden
    obs = obs_ref[0, :, :]                  # (TB, obs_dim)
    act = act_ref[0, :, :]                  # (TB, act_dim)

    # fc1 + ReLU  (concat folded in: x @ W1 == obs @ W1_obs + act @ W1_act)
    fc1 = (jnp.dot(obs, w1o_ref[...], preferred_element_type=jnp.float32)
           + jnp.dot(act, w1a_ref[...], preferred_element_type=jnp.float32)
           + b_ref[0:1, :])
    fc1 = jnp.maximum(fc1, 0.0)

    # GRUCell (PyTorch semantics, gate order r, z, n) with per-gate dots.
    # wg layout: [ih_r, ih_z, ih_n, hh_r, hh_z, hh_n], each (E, E), pre-transposed.
    # b  layout: [b1, b_r(=bih_r+bhh_r), b_z(=bih_z+bhh_z), bih_n, bhh_n, b2].
    gi_r = jnp.dot(fc1, wg_ref[0, :, :], preferred_element_type=jnp.float32)
    gi_z = jnp.dot(fc1, wg_ref[1, :, :], preferred_element_type=jnp.float32)
    gi_n = jnp.dot(fc1, wg_ref[2, :, :], preferred_element_type=jnp.float32) + b_ref[3:4, :]
    gh_r = jnp.dot(h,   wg_ref[3, :, :], preferred_element_type=jnp.float32)
    gh_z = jnp.dot(h,   wg_ref[4, :, :], preferred_element_type=jnp.float32)
    gh_n = jnp.dot(h,   wg_ref[5, :, :], preferred_element_type=jnp.float32) + b_ref[4:5, :]

    r = jax.nn.sigmoid(gi_r + gh_r + b_ref[1:2, :])
    z = jax.nn.sigmoid(gi_z + gh_z + b_ref[2:3, :])
    n = jnp.tanh(gi_n + r * gh_n)
    h_new = (1.0 - z) * n + z * h

    h_scr[...] = h_new                      # carry hidden to next timestep

    # fc2 output for this timestep
    y_ref[0, :, :] = (jnp.dot(h_new, w2_ref[...],
                              preferred_element_type=jnp.float32) + b_ref[5:6, :])

    @pl.when(t == pl.num_programs(1) - 1)
    def _():
        hT_ref[...] = h_new                 # final hidden (== self.rnn_hidden)


# ---------------------------------------------------------------------------
# Wrapper
# ---------------------------------------------------------------------------
def agent_embedding_forward_seq(obs_seq, act_seq, h0, packed, *, batch_block=None):
    """Run T recurrent steps in one pallas_call.

    obs_seq: (T, B, obs_dim), act_seq: (T, B, act_dim), h0: (B, E)
    Returns (fc2_out of shape (T, B, E), final hidden of shape (B, E)).
    """
    T, B, obs_dim = obs_seq.shape
    act_dim = act_seq.shape[-1]
    E = h0.shape[-1]
    w1o, w1a, wg, b, w2 = packed

    TB = B if batch_block is None else batch_block
    nb = pl.cdiv(B, TB)

    const2 = lambda bi, t: (0, 0)
    const3 = lambda bi, t: (0, 0, 0)

    in_specs = [
        pl.BlockSpec((1, TB, obs_dim), lambda bi, t: (t, bi, 0)),   # obs[t]
        pl.BlockSpec((1, TB, act_dim), lambda bi, t: (t, bi, 0)),   # last_a[t]
        pl.BlockSpec((TB, E),          lambda bi, t: (bi, 0)),      # h0
        pl.BlockSpec((obs_dim, E),     const2),                     # W1_obs (resident)
        pl.BlockSpec((act_dim, E),     const2),                     # W1_act (resident)
        pl.BlockSpec((6, E, E),        const3),                     # GRU gate weights (resident)
        pl.BlockSpec((6, E),           const2),                     # packed biases (resident)
        pl.BlockSpec((E, E),           const2),                     # W2 (resident)
    ]
    out_specs = (
        pl.BlockSpec((1, TB, E), lambda bi, t: (t, bi, 0)),         # fc2 out per step
        pl.BlockSpec((TB, E),    lambda bi, t: (bi, 0)),            # final hidden
    )
    out_shape = (jax.ShapeDtypeStruct((T, B, E), jnp.float32),
                 jax.ShapeDtypeStruct((B, E), jnp.float32))

    y, hT = pl.pallas_call(
        agent_embedding_kernel,
        grid=(nb, T),
        in_specs=in_specs,
        out_specs=out_specs,
        out_shape=out_shape,
        scratch_shapes=[pltpu.VMEM((TB, E), jnp.float32)],
        compiler_params=pltpu.CompilerParams(
            dimension_semantics=("parallel", "arbitrary")),
    )(obs_seq, act_seq, h0, w1o, w1a, wg, b, w2)
    return y, hT


def agent_embedding_step(obs, last_a, h_prev, packed):
    """Single-step forward, matching Agent_Embedding.forward()."""
    y, h = agent_embedding_forward_seq(obs[None], last_a[None], h_prev, packed)
    return y[0], h


# ---------------------------------------------------------------------------
# Parameter init (PyTorch layout) + packing for the kernel
# ---------------------------------------------------------------------------
def init_torch_params(key, obs_dim, act_dim, E):
    """PyTorch-default uniform(-1/sqrt(fan_in), 1/sqrt(fan_in)) init, torch layout."""
    D = obs_dim + act_dim
    ks = jax.random.split(key, 8)

    def u(k, shape, fan):
        bound = 1.0 / math.sqrt(fan)
        return jax.random.uniform(k, shape, jnp.float32, -bound, bound)

    fc1_w = u(ks[0], (E, D), D)          # fc1.weight
    fc1_b = u(ks[1], (E,), D)            # fc1.bias
    wih   = u(ks[2], (3 * E, E), E)      # gru.weight_ih  (gate order r, z, n)
    bih   = u(ks[3], (3 * E,), E)        # gru.bias_ih
    whh   = u(ks[4], (3 * E, E), E)      # gru.weight_hh
    bhh   = u(ks[5], (3 * E,), E)        # gru.bias_hh
    fc2_w = u(ks[6], (E, E), E)          # fc2.weight
    fc2_b = u(ks[7], (E,), E)            # fc2.bias
    return fc1_w, fc1_b, wih, bih, whh, bhh, fc2_w, fc2_b


def pack_params(torch_params, obs_dim):
    """Offline repack: transpose, split fc1 by obs/act, split GRU weights per gate,
    stack biases (pre-summing the r/z input+hidden biases)."""
    fc1_w, fc1_b, wih, bih, whh, bhh, fc2_w, fc2_b = torch_params
    E = fc1_w.shape[0]

    w1 = fc1_w.T                          # (D, E)
    w1o = w1[:obs_dim, :]                 # (obs_dim, E)
    w1a = w1[obs_dim:, :]                 # (act_dim, E)

    wih_t = wih.T                         # (E, 3E)
    whh_t = whh.T
    wg = jnp.stack([wih_t[:, 0:E], wih_t[:, E:2 * E], wih_t[:, 2 * E:3 * E],
                    whh_t[:, 0:E], whh_t[:, E:2 * E], whh_t[:, 2 * E:3 * E]],
                   axis=0)                # (6, E, E)

    b = jnp.stack([fc1_b,
                   bih[0:E] + bhh[0:E],               # r-gate bias (pre-summed)
                   bih[E:2 * E] + bhh[E:2 * E],       # z-gate bias (pre-summed)
                   bih[2 * E:3 * E],                  # n-gate input bias
                   bhh[2 * E:3 * E],                  # n-gate hidden bias
                   fc2_b], axis=0)        # (6, E)

    return w1o, w1a, wg, b, fc2_w.T


# ---------------------------------------------------------------------------
# Pure-JAX reference mirroring the PyTorch module called T times
# ---------------------------------------------------------------------------
def reference_forward_seq(obs_seq, act_seq, h0, torch_params):
    fc1_w, fc1_b, wih, bih, whh, bhh, fc2_w, fc2_b = torch_params
    E = h0.shape[-1]

    def step(h, xs):
        obs, act = xs
        x = jnp.concatenate([obs, act], axis=-1)
        f = jax.nn.relu(x @ fc1_w.T + fc1_b)
        gi = f @ wih.T + bih
        gh = h @ whh.T + bhh
        r = jax.nn.sigmoid(gi[:, :E] + gh[:, :E])
        z = jax.nn.sigmoid(gi[:, E:2 * E] + gh[:, E:2 * E])
        n = jnp.tanh(gi[:, 2 * E:] + r * gh[:, 2 * E:])
        h_new = (1.0 - z) * n + z * h
        return h_new, h_new @ fc2_w.T + fc2_b

    hT, ys = jax.lax.scan(step, h0, (obs_seq, act_seq))
    return ys, hT


# ---------------------------------------------------------------------------
if __name__ == "__main__":
    # Small synthetic config consistent with the module's __init__.
    obs_dim, action_dim, embed_dim = 24, 8, 32
    batch, seq = 8, 8
    # NOTE: with E=32 / B=8 the kernel is inherently lane-sparse and overhead-
    # bound; padding embed_dim to 128 / batching agents is a model-config change.

    key = jax.random.PRNGKey(0)
    k_obs, k_act, k_par = jax.random.split(key, 3)

    obs_seq = jax.random.normal(k_obs, (seq, batch, obs_dim), jnp.float32)
    act_seq = jax.random.normal(k_act, (seq, batch, action_dim), jnp.float32)
    # rnn_hidden is None on the first call -> zeros (PyTorch GRUCell default).
    h0 = jnp.zeros((batch, embed_dim), jnp.float32)

    torch_params = init_torch_params(k_par, obs_dim, action_dim, embed_dim)
    packed = pack_params(torch_params, obs_dim)

    # Full recurrent rollout in a single pallas_call.
    y_seq, h_T = agent_embedding_forward_seq(obs_seq, act_seq, h0, packed)
    jax.block_until_ready((y_seq, h_T))

    ref_y, ref_h = reference_forward_seq(obs_seq, act_seq, h0, torch_params)
    assert jnp.allclose(y_seq, ref_y, atol=1e-4, rtol=1e-4), \
        float(jnp.max(jnp.abs(y_seq - ref_y)))
    assert jnp.allclose(h_T, ref_h, atol=1e-4, rtol=1e-4)

    # Single-step path (== one call of Agent_Embedding.forward).
    y0, h1 = agent_embedding_step(obs_seq[0], act_seq[0], h0, packed)
    jax.block_until_ready((y0, h1))
    assert jnp.allclose(y0, ref_y[0], atol=1e-4, rtol=1e-4)

    print("KERNEL_OK")
</pallas_src>

<mosaic_0001>
module attributes {stable_mosaic.version = 11 : i64} {
  func.func @agent_embedding_kernel(%arg0: i32, %arg1: i32, %arg2: memref<1x8x24xf32, #tpu.memory_space<vmem>>, %arg3: memref<1x8x8xf32, #tpu.memory_space<vmem>>, %arg4: memref<8x32xf32, #tpu.memory_space<vmem>>, %arg5: memref<24x32xf32, #tpu.memory_space<vmem>>, %arg6: memref<8x32xf32, #tpu.memory_space<vmem>>, %arg7: memref<6x32x32xf32, #tpu.memory_space<vmem>>, %arg8: memref<6x32xf32, #tpu.memory_space<vmem>>, %arg9: memref<32x32xf32, #tpu.memory_space<vmem>>, %arg10: memref<1x8x32xf32, #tpu.memory_space<vmem>>, %arg11: memref<8x32xf32, #tpu.memory_space<vmem>>, %arg12: memref<8x32xf32, #tpu.memory_space<vmem>>) attributes {dimension_semantics = [#tpu.dimension_semantics<parallel>, #tpu.dimension_semantics<arbitrary>], iteration_bounds = array<i64: 1, 8>, scalar_prefetch = 0 : i64, scratch_operands = 1 : i64, tpu.core_type = #tpu.core_type<tc>, window_params = [{transform_indices = @transform_0, window_bounds = array<i64: 1, 8, 24>}, {transform_indices = @transform_1, window_bounds = array<i64: 1, 8, 8>}, {transform_indices = @transform_2, window_bounds = array<i64: 8, 32>}, {pipeline_mode = #tpu.pipeline_mode<synchronous>, transform_indices = @transform_3, window_bounds = array<i64: 24, 32>}, {pipeline_mode = #tpu.pipeline_mode<synchronous>, transform_indices = @transform_4, window_bounds = array<i64: 8, 32>}, {pipeline_mode = #tpu.pipeline_mode<synchronous>, transform_indices = @transform_5, window_bounds = array<i64: 6, 32, 32>}, {pipeline_mode = #tpu.pipeline_mode<synchronous>, transform_indices = @transform_6, window_bounds = array<i64: 6, 32>}, {pipeline_mode = #tpu.pipeline_mode<synchronous>, transform_indices = @transform_7, window_bounds = array<i64: 32, 32>}, {transform_indices = @transform_8, window_bounds = array<i64: 1, 8, 32>}, {transform_indices = @transform_9, window_bounds = array<i64: 8, 32>}]} {
    %c0_i32 = arith.constant 0 : i32
    %0 = arith.cmpi eq, %arg1, %c0_i32 : i32
    %1 = arith.extui %0 : i1 to i32
    %c0_i32_0 = arith.constant 0 : i32
    %2 = arith.cmpi ne, %1, %c0_i32_0 : i32
    scf.if %2 {
      %c0_57 = arith.constant 0 : index
      %c0_58 = arith.constant 0 : index
      %80 = vector.load %arg4[%c0_57, %c0_58] : memref<8x32xf32, #tpu.memory_space<vmem>>, vector<8x32xf32>
      %c0_59 = arith.constant 0 : index
      %c0_60 = arith.constant 0 : index
      %81 = vector.load %arg12[%c0_59, %c0_60] : memref<8x32xf32, #tpu.memory_space<vmem>>, vector<8x32xf32>
      tpu.vector_store %arg12[%c0_59, %c0_60], %80 {strides = array<i32>} : memref<8x32xf32, #tpu.memory_space<vmem>>, vector<8x32xf32>,
    } else {
    }
    %c0 = arith.constant 0 : index
    %c0_1 = arith.constant 0 : index
    %3 = vector.load %arg12[%c0, %c0_1] : memref<8x32xf32, #tpu.memory_space<vmem>>, vector<8x32xf32>
    %c0_2 = arith.constant 0 : index
    %c0_3 = arith.constant 0 : index
    %c0_4 = arith.constant 0 : index
    %4 = vector.load %arg2[%c0_2, %c0_3, %c0_4] : memref<1x8x24xf32, #tpu.memory_space<vmem>>, vector<1x8x24xf32>
    %5 = vector.shape_cast %4 : vector<1x8x24xf32> to vector<8x24xf32>
    %c0_5 = arith.constant 0 : index
    %c0_6 = arith.constant 0 : index
    %c0_7 = arith.constant 0 : index
    %6 = vector.load %arg3[%c0_5, %c0_6, %c0_7] : memref<1x8x8xf32, #tpu.memory_space<vmem>>, vector<1x8x8xf32>
    %7 = vector.shape_cast %6 : vector<1x8x8xf32> to vector<8x8xf32>
    %c0_8 = arith.constant 0 : index
    %c0_9 = arith.constant 0 : index
    %8 = vector.load %arg5[%c0_8, %c0_9] : memref<24x32xf32, #tpu.memory_space<vmem>>, vector<24x32xf32>
    %cst = arith.constant dense<0.000000e+00> : vector<8x32xf32>
    %9 = tpu.matmul %5, %8, %cst {dimension_numbers = #tpu.dot_dimension_numbers<[1], [0], [0], [1], [0, 0, 1, 1], [], []>} : vector<8x24xf32>, vector<24x32xf32>, vector<8x32xf32> -> vector<8x32xf32>
    %c0_10 = arith.constant 0 : index
    %c0_11 = arith.constant 0 : index
    %10 = vector.load %arg6[%c0_10, %c0_11] : memref<8x32xf32, #tpu.memory_space<vmem>>, vector<8x32xf32>
    %cst_12 = arith.constant dense<0.000000e+00> : vector<8x32xf32>
    %11 = tpu.matmul %7, %10, %cst_12 {dimension_numbers = #tpu.dot_dimension_numbers<[1], [0], [0], [1], [0, 0, 1, 1], [], []>} : vector<8x8xf32>, vector<8x32xf32>, vector<8x32xf32> -> vector<8x32xf32>
    %12 = arith.addf %9, %11 : vector<8x32xf32>
    %c0_13 = arith.constant 0 : index
    %c0_14 = arith.constant 0 : index
    %13 = vector.load %arg8[%c0_13, %c0_14] : memref<6x32xf32, #tpu.memory_space<vmem>>, vector<1x32xf32>
    %14 = vector.broadcast %13 : vector<1x32xf32> to vector<8x32xf32>
    %15 = arith.addf %12, %14 : vector<8x32xf32>
    %cst_15 = arith.constant 0.000000e+00 : f32
    %16 = vector.broadcast %cst_15 : f32 to vector<8x32xf32>
    %17 = arith.maximumf %15, %16 : vector<8x32xf32>
    %c0_16 = arith.constant 0 : index
    %c0_17 = arith.constant 0 : index
    %c0_18 = arith.constant 0 : index
    %18 = vector.load %arg7[%c0_16, %c0_17, %c0_18] : memref<6x32x32xf32, #tpu.memory_space<vmem>>, vector<1x32x32xf32>
    %19 = vector.shape_cast %18 : vector<1x32x32xf32> to vector<32x32xf32>
    %cst_19 = arith.constant dense<0.000000e+00> : vector<8x32xf32>
    %20 = tpu.matmul %17, %19, %cst_19 {dimension_numbers = #tpu.dot_dimension_numbers<[1], [0], [0], [1], [0, 0, 1, 1], [], []>} : vector<8x32xf32>, vector<32x32xf32>, vector<8x32xf32> -> vector<8x32xf32>
    %c1 = arith.constant 1 : index
    %c0_20 = arith.constant 0 : index
    %c0_21 = arith.constant 0 : index
    %21 = vector.load %arg7[%c1, %c0_20, %c0_21] : memref<6x32x32xf32, #tpu.memory_space<vmem>>, vector<1x32x32xf32>
    %22 = vector.shape_cast %21 : vector<1x32x32xf32> to vector<32x32xf32>
    %cst_22 = arith.constant dense<0.000000e+00> : vector<8x32xf32>
    %23 = tpu.matmul %17, %22, %cst_22 {dimension_numbers = #tpu.dot_dimension_numbers<[1], [0], [0], [1], [0, 0, 1, 1], [], []>} : vector<8x32xf32>, vector<32x32xf32>, vector<8x32xf32> -> vector<8x32xf32>
    %c2 = arith.constant 2 : index
    %c0_23 = arith.constant 0 : index
    %c0_24 = arith.constant 0 : index
    %24 = vector.load %arg7[%c2, %c0_23, %c0_24] : memref<6x32x32xf32, #tpu.memory_space<vmem>>, vector<1x32x32xf32>
    %25 = vector.shape_cast %24 : vector<1x32x32xf32> to vector<32x32xf32>
    %cst_25 = arith.constant dense<0.000000e+00> : vector<8x32xf32>
    %26 = tpu.matmul %17, %25, %cst_25 {dimension_numbers = #tpu.dot_dimension_numbers<[1], [0], [0], [1], [0, 0, 1, 1], [], []>} : vector<8x32xf32>, vector<32x32xf32>, vector<8x32xf32> -> vector<8x32xf32>
    %c3 = arith.constant 3 : index
    %c0_26 = arith.constant 0 : index
    %27 = vector.load %arg8[%c3, %c0_26] : memref<6x32xf32, #tpu.memory_space<vmem>>, vector<1x32xf32>
    %28 = vector.broadcast %27 : vector<1x32xf32> to vector<8x32xf32>
    %29 = arith.addf %26, %28 : vector<8x32xf32>
    %c3_27 = arith.constant 3 : index
    %c0_28 = arith.constant 0 : index
    %c0_29 = arith.constant 0 : index
    %30 = vector.load %arg7[%c3_27, %c0_28, %c0_29] : memref<6x32x32xf32, #tpu.memory_space<vmem>>, vector<1x32x32xf32>
    %31 = vector.shape_cast %30 : vector<1x32x32xf32> to vector<32x32xf32>
    %cst_30 = arith.constant dense<0.000000e+00> : vector<8x32xf32>
    %32 = tpu.matmul %3, %31, %cst_30 {dimension_numbers = #tpu.dot_dimension_numbers<[1], [0], [0], [1], [0, 0, 1, 1], [], []>} : vector<8x32xf32>, vector<32x32xf32>, vector<8x32xf32> -> vector<8x32xf32>
    %c4 = arith.constant 4 : index
    %c0_31 = arith.constant 0 : index
    %c0_32 = arith.constant 0 : index
    %33 = vector.load %arg7[%c4, %c0_31, %c0_32] : memref<6x32x32xf32, #tpu.memory_space<vmem>>, vector<1x32x32xf32>
    %34 = vector.shape_cast %33 : vector<1x32x32xf32> to vector<32x32xf32>
    %cst_33 = arith.constant dense<0.000000e+00> : vector<8x32xf32>
    %35 = tpu.matmul %3, %34, %cst_33 {dimension_numbers = #tpu.dot_dimension_numbers<[1], [0], [0], [1], [0, 0, 1, 1], [], []>} : vector<8x32xf32>, vector<32x32xf32>, vector<8x32xf32> -> vector<8x32xf32>
    %c5 = arith.constant 5 : index
    %c0_34 = arith.constant 0 : index
    %c0_35 = arith.constant 0 : index
    %36 = vector.load %arg7[%c5, %c0_34, %c0_35] : memref<6x32x32xf32, #tpu.memory_space<vmem>>, vector<1x32x32xf32>
    %37 = vector.shape_cast %36 : vector<1x32x32xf32> to vector<32x32xf32>
    %cst_36 = arith.constant dense<0.000000e+00> : vector<8x32xf32>
    %38 = tpu.matmul %3, %37, %cst_36 {dimension_numbers = #tpu.dot_dimension_numbers<[1], [0], [0], [1], [0, 0, 1, 1], [], []>} : vector<8x32xf32>, vector<32x32xf32>, vector<8x32xf32> -> vector<8x32xf32>
    %c4_37 = arith.constant 4 : index
    %c0_38 = arith.constant 0 : index
    %39 = vector.load %arg8[%c4_37, %c0_38] : memref<6x32xf32, #tpu.memory_space<vmem>>, vector<1x32xf32>
    %40 = vector.broadcast %39 : vector<1x32xf32> to vector<8x32xf32>
    %41 = arith.addf %38, %40 : vector<8x32xf32>
    %42 = arith.addf %20, %32 : vector<8x32xf32>
    %c1_39 = arith.constant 1 : index
    %c0_40 = arith.constant 0 : index
    %43 = vector.load %arg8[%c1_39, %c0_40] : memref<6x32xf32, #tpu.memory_space<vmem>>, vector<1x32xf32>
    %44 = vector.broadcast %43 : vector<1x32xf32> to vector<8x32xf32>
    %45 = arith.addf %42, %44 : vector<8x32xf32>
    %46 = arith.negf %45 : vector<8x32xf32>
    %47 = math.exp %46 : vector<8x32xf32>
    %cst_41 = arith.constant 1.000000e+00 : f32
    %48 = vector.broadcast %cst_41 : f32 to vector<8x32xf32>
    %49 = arith.addf %48, %47 : vector<8x32xf32>
    %50 = arith.divf %48, %49 : vector<8x32xf32>
    %51 = arith.addf %23, %35 : vector<8x32xf32>
    %c2_42 = arith.constant 2 : index
    %c0_43 = arith.constant 0 : index
    %52 = vector.load %arg8[%c2_42, %c0_43] : memref<6x32xf32, #tpu.memory_space<vmem>>, vector<1x32xf32>
    %53 = vector.broadcast %52 : vector<1x32xf32> to vector<8x32xf32>
    %54 = arith.addf %51, %53 : vector<8x32xf32>
    %55 = arith.negf %54 : vector<8x32xf32>
    %56 = math.exp %55 : vector<8x32xf32>
    %cst_44 = arith.constant 1.000000e+00 : f32
    %57 = vector.broadcast %cst_44 : f32 to vector<8x32xf32>
    %58 = arith.addf %57, %56 : vector<8x32xf32>
    %59 = arith.divf %57, %58 : vector<8x32xf32>
    %60 = arith.mulf %50, %41 : vector<8x32xf32>
    %61 = arith.addf %29, %60 : vector<8x32xf32>
    %62 = math.tanh %61 : vector<8x32xf32>
    %cst_45 = arith.constant 1.000000e+00 : f32
    %63 = vector.broadcast %cst_45 : f32 to vector<8x32xf32>
    %64 = arith.subf %63, %59 : vector<8x32xf32>
    %65 = arith.mulf %64, %62 : vector<8x32xf32>
    %66 = arith.mulf %59, %3 : vector<8x32xf32>
    %67 = arith.addf %65, %66 : vector<8x32xf32>
    %c0_46 = arith.constant 0 : index
    %c0_47 = arith.constant 0 : index
    %68 = vector.load %arg12[%c0_46, %c0_47] : memref<8x32xf32, #tpu.memory_space<vmem>>, vector<8x32xf32>
    tpu.vector_store %arg12[%c0_46, %c0_47], %67 {strides = array<i32>} : memref<8x32xf32, #tpu.memory_space<vmem>>, vector<8x32xf32>,
    %c0_48 = arith.constant 0 : index
    %c0_49 = arith.constant 0 : index
    %69 = vector.load %arg9[%c0_48, %c0_49] : memref<32x32xf32, #tpu.memory_space<vmem>>, vector<32x32xf32>
    %cst_50 = arith.constant dense<0.000000e+00> : vector<8x32xf32>
    %70 = tpu.matmul %67, %69, %cst_50 {dimension_numbers = #tpu.dot_dimension_numbers<[1], [0], [0], [1], [0, 0, 1, 1], [], []>} : vector<8x32xf32>, vector<32x32xf32>, vector<8x32xf32> -> vector<8x32xf32>
    %c5_51 = arith.constant 5 : index
    %c0_52 = arith.constant 0 : index
    %71 = vector.load %arg8[%c5_51, %c0_52] : memref<6x32xf32, #tpu.memory_space<vmem>>, vector<1x32xf32>
    %72 = vector.broadcast %71 : vector<1x32xf32> to vector<8x32xf32>
    %73 = arith.addf %70, %72 : vector<8x32xf32>
    %c0_53 = arith.constant 0 : index
    %c0_54 = arith.constant 0 : index
    %c0_55 = arith.constant 0 : index
    %74 = vector.load %arg10[%c0_53, %c0_54, %c0_55] : memref<1x8x32xf32, #tpu.memory_space<vmem>>, vector<1x8x32xf32>
    %75 = vector.shape_cast %74 : vector<1x8x32xf32> to vector<8x32xf32>
    %76 = vector.shape_cast %73 : vector<8x32xf32> to vector<1x8x32xf32>
    tpu.vector_store %arg10[%c0_53, %c0_54, %c0_55], %76 {strides = array<i32>} : memref<1x8x32xf32, #tpu.memory_space<vmem>>, vector<1x8x32xf32>,
    %c7_i32 = arith.constant 7 : i32
    %77 = arith.cmpi eq, %arg1, %c7_i32 : i32
    %78 = arith.extui %77 : i1 to i32
    %c0_i32_56 = arith.constant 0 : i32
    %79 = arith.cmpi ne, %78, %c0_i32_56 : i32
    scf.if %79 {
      %c0_57 = arith.constant 0 : index
      %c0_58 = arith.constant 0 : index
      %80 = vector.load %arg11[%c0_57, %c0_58] : memref<8x32xf32, #tpu.memory_space<vmem>>, vector<8x32xf32>
      tpu.vector_store %arg11[%c0_57, %c0_58], %67 {strides = array<i32>} : memref<8x32xf32, #tpu.memory_space<vmem>>, vector<8x32xf32>,
    } else {
    }
    return
  }
  func.func @transform_0(%arg0: i32, %arg1: i32) -> (i32, i32, i32) {
    %c0_i32 = arith.constant 0 : i32
    %c0_i32_0 = arith.constant 0 : i32
    return %arg1, %arg0, %c0_i32 : i32, i32, i32
  }
  func.func @transform_1(%arg0: i32, %arg1: i32) -> (i32, i32, i32) {
    %c0_i32 = arith.constant 0 : i32
    %c0_i32_0 = arith.constant 0 : i32
    return %arg1, %arg0, %c0_i32 : i32, i32, i32
  }
  func.func @transform_2(%arg0: i32, %arg1: i32) -> (i32, i32) {
    %c0_i32 = arith.constant 0 : i32
    %c0_i32_0 = arith.constant 0 : i32
    return %arg0, %c0_i32 : i32, i32
  }
  func.func @transform_3(%arg0: i32, %arg1: i32) -> (i32, i32) {
    %c0_i32 = arith.constant 0 : i32
    %c0_i32_0 = arith.constant 0 : i32
    %c0_i32_1 = arith.constant 0 : i32
    return %c0_i32, %c0_i32_0 : i32, i32
  }
  func.func @transform_4(%arg0: i32, %arg1: i32) -> (i32, i32) {
    %c0_i32 = arith.constant 0 : i32
    %c0_i32_0 = arith.constant 0 : i32
    %c0_i32_1 = arith.constant 0 : i32
    return %c0_i32, %c0_i32_0 : i32, i32
  }
  func.func @transform_5(%arg0: i32, %arg1: i32) -> (i32, i32, i32) {
    %c0_i32 = arith.constant 0 : i32
    %c0_i32_0 = arith.constant 0 : i32
    %c0_i32_1 = arith.constant 0 : i32
    %c0_i32_2 = arith.constant 0 : i32
    return %c0_i32, %c0_i32_0, %c0_i32_1 : i32, i32, i32
  }
  func.func @transform_6(%arg0: i32, %arg1: i32) -> (i32, i32) {
    %c0_i32 = arith.constant 0 : i32
    %c0_i32_0 = arith.constant 0 : i32
    %c0_i32_1 = arith.constant 0 : i32
    return %c0_i32, %c0_i32_0 : i32, i32
  }
  func.func @transform_7(%arg0: i32, %arg1: i32) -> (i32, i32) {
    %c0_i32 = arith.constant 0 : i32
    %c0_i32_0 = arith.constant 0 : i32
    %c0_i32_1 = arith.constant 0 : i32
    return %c0_i32, %c0_i32_0 : i32, i32
  }
  func.func @transform_8(%arg0: i32, %arg1: i32) -> (i32, i32, i32) {
    %c0_i32 = arith.constant 0 : i32
    %c0_i32_0 = arith.constant 0 : i32
    return %arg1, %arg0, %c0_i32 : i32, i32, i32
  }
  func.func @transform_9(%arg0: i32, %arg1: i32) -> (i32, i32) {
    %c0_i32 = arith.constant 0 : i32
    %c0_i32_0 = arith.constant 0 : i32
    return %arg0, %c0_i32 : i32, i32
  }
}

</mosaic_0001>

<llo_original>
// kernel: tpu_custom_call.1
$region0: #{tpu_custom_call.1}
  #allocation0 [shape = 'u32[]', space=smem, size = 0x4, offset = 0x4, fixed_abs, tag = 'smem constant byte address 0x4 - core index']
  #allocation1 [shape = 'u32[144,128]{1,0:T(1,128)}', space=vmem, size = 0x12000, scoped, tag = 'internal scratch']
  #allocation2 [shape = 'f32[8,32]{1,0:T(8,128)}', space=vmem, size = 0x1000, scoped, tag = 'scratch operand']
  %s0 = inlined_call_operand.hbm [shape: f32[8,8,24], index: 0, kind: input, shape index: {}]
  %s1 = inlined_call_operand.hbm [shape: f32[8,8,8], index: 1, kind: input, shape index: {}]
  %s2 = inlined_call_operand.hbm [shape: f32[8,32], index: 2, kind: input, shape index: {}]
  %s3 = inlined_call_operand.hbm [shape: f32[24,32], index: 3, kind: input, shape index: {}]
  %s4 = inlined_call_operand.hbm [shape: f32[8,32], index: 4, kind: input, shape index: {}]
  %s5 = inlined_call_operand.hbm [shape: f32[6,32,32], index: 5, kind: input, shape index: {}]
  %s6 = inlined_call_operand.vmem [shape: f32[6,32], index: 6, kind: input, shape index: {}]
  %s7 = inlined_call_operand.hbm [shape: f32[32,32], index: 7, kind: input, shape index: {}]
  %s8 = inlined_call_operand.hbm [shape: f32[8,8,32], index: 8, kind: output, shape index: {0}]
  %s9 = inlined_call_operand.hbm [shape: f32[8,32], index: 9, kind: output, shape index: {1}]
  %10 = xla_tuple %s8, %s9
  %s11 = sld [smem:[#allocation0]]
  $region109: #{tpu_custom_call.1} parent=0
    _
  %s13 = ssub.s32 1, %s11
  %s14 = scalar_select 0, %s13, %s11
  $region1: #{tpu_custom_call.1} parent=0
    #allocation3 [shape = 'u8[8192]{0}', space=vmem, size = 0x2000, scoped, tag = 'input window, operand 0']
    #allocation4 [shape = 's32[2]{0}', space=sflag, size = 0x8, scoped, tag = 'scoped memory for tpu_custom_call.1']
    #allocation5 [shape = 's32[2]{0}', space=sflag, size = 0x8, scoped, tag = 'scoped memory for tpu_custom_call.1']
    #allocation6 [shape = 'u8[8192]{0}', space=vmem, size = 0x2000, scoped, tag = 'input window, operand 1']
    #allocation7 [shape = 's32[2]{0}', space=sflag, size = 0x8, scoped, tag = 'scoped memory for tpu_custom_call.1']
    #allocation8 [shape = 'u8[4096]{0}', space=vmem, size = 0x1000, scoped, tag = 'input window, operand 2, single buffered']
    #allocation9 [shape = 'u8[12288]{0}', space=vmem, size = 0x3000, scoped, tag = 'input window, operand 3, single buffered']
    #allocation10 [shape = 's32[1]{0}', space=sflag, size = 0x4, scoped, tag = 'scoped memory for tpu_custom_call.1']
    #allocation11 [shape = 'u8[4096]{0}', space=vmem, size = 0x1000, scoped, tag = 'input window, operand 4, single buffered']
    #allocation12 [shape = 'u8[98304]{0}', space=vmem, size = 0x18000, scoped, tag = 'input window, operand 5, single buffered']
    #allocation13 [shape = 's32[1]{0}', space=sflag, size = 0x4, scoped, tag = 'scoped memory for tpu_custom_call.1']
    #allocation14 [shape = 'u8[16384]{0}', space=vmem, size = 0x4000, scoped, tag = 'input window, operand 7, single buffered']
    #allocation15 [shape = 'u8[8192]{0}', space=vmem, size = 0x2000, scoped, tag = 'output window, operand 0']
    #allocation16 [shape = 'u8[4096]{0}', space=vmem, size = 0x1000, scoped, tag = 'output window, operand 1, single buffered']
    #allocation17 [shape = 's32[1]{0}', space=sflag, size = 0x4, scoped, tag = 'scoped memory for tpu_custom_call.1']
    %15 = vsyncpa [#allocation4], 0
    %s16 = scalar_lea.sflag [#allocation4], 1
    %17 = vsyncpa %s16, 0
    %18 = vsyncpa [#allocation7], 0
    %s19 = scalar_lea.sflag [#allocation7], 1
    %20 = vsyncpa %s19, 0
    %21 = vsyncpa [#allocation10], 0
    %22 = vsyncpa [#allocation13], 0
    %23 = vsyncpa [#allocation5], 0
    %s24 = scalar_lea.sflag [#allocation5], 1
    %25 = vsyncpa %s24, 0
    %26 = vsyncpa [#allocation17], 0
    loop: start=0, step=1, limit=10
    $region2: #{tpu_custom_call.1} parent=1 // loop_pre_header
      _
    $region3: #{tpu_custom_call.1} parent=1 // loop_header
      %s28 = sphi 0, %s32
      %p29 = scmp.ge.s32.totalorder %s28, 10
      %s35 = sphi 0, %s47
      %s36 = sphi 0, %s43
      %s37 = sphi 0, %s35
      %s38 = sphi 0, %s36
      %s39 = sphi 0, %s37
      %s40 = sphi 0, %s38
      %s52 = sphi 0, %s54
      %s55 = sphi 0, %s52
      %s56 = sphi 0, %s55
      %s72 = sphi 0, %s56
      %s80 = sphi 0, %s82
      %s83 = sphi 0, %s80
      %s84 = sphi 0, %s83
      %s100 = sphi 0, %s84
      %s106 = sphi 0, %s108
      %s109 = sphi 0, %s106
      %s110 = sphi 0, %s109
      %s126 = sphi 0, %s110
      %s130 = sphi 0, %s130
      %s132 = sphi 0, %s130
      %s133 = sphi 0, %s132
      %s147 = sphi 0, %s133
      %s151 = sphi 0, %s151
      %s153 = sphi 0, %s151
      %s154 = sphi 0, %s153
      %s168 = sphi 0, %s154
      %s172 = sphi 0, %s172
      %s174 = sphi 0, %s172
      %s175 = sphi 0, %s174
      %s189 = sphi 0, %s175
      %s193 = sphi 0, %s193
      %s195 = sphi 0, %s193
      %s196 = sphi 0, %s195
      %s210 = sphi 0, %s196
      %s214 = sphi 0, %s214
      %s216 = sphi 0, %s214
      %s217 = sphi 0, %s216
      %s231 = sphi 0, %s217
      %s239 = sphi 0, %s241
      %s242 = sphi 0, %s239
      %s243 = sphi 0, %s242
      %s259 = sphi 0, %s243
      %s265 = sphi 0, %s267
      %s268 = sphi 0, %s265
      %s269 = sphi 0, %s268
      %s285 = sphi 0, %s269
    $region4: #{tpu_custom_call.1} parent=1 // loop_header_branch
      %31 = sbr.rel (%p29) target = $region8
    $region5: #{tpu_custom_call.1} parent=1 // loop_body
      %s33 = ssub.s32 %s28, 1
      %s34 = ssub.s32 %s28, 2
      %s41 = sadd.s32 1, %s36
      %p42 = scmp.ge.s32.totalorder %s41, 8
      %s43 = scalar_select %p42, 0, %s41
      %s44 = sadd.s32 1, %s35
      %s45 = scalar_select %p42, %s44, %s35
      %p46 = scmp.ge.s32.totalorder %s45, 1
      %s47 = scalar_select %p46, 0, %s45
      %s48 = ssub.s32 %s36, %s43
      %s49 = ssub.s32 %s35, %s47
      %s50 = sor.u32 %s48, %s49
      %p51 = scmp.eq.s32.totalorder %s50, 0
      %s53 = sadd.s32 %s52, 1
      %s54 = scalar_select %p51, %s52, %s53
      %p57 = pneg %p51
      %p58 = scmp.eq.s32.totalorder %s28, 7
      %p59 = por %p57, %p58
      %p60 = scmp.ne.s32.totalorder %s52, %s55
      %p61 = scmp.eq.s32.totalorder %s28, 0
      %p62 = por %p60, %p61
      %p63 = scmp.ne.s32.totalorder %s52, %s55
      %p64 = scmp.eq.s32.totalorder %s33, 7
      %p65 = por %p63, %p64
      %p66 = scmp.ne.s32.totalorder %s55, %s56
      %p67 = scmp.eq.s32.totalorder %s33, 0
      %p68 = por %p66, %p67
      %p69 = scmp.ne.s32.totalorder %s55, %s56
      %p70 = scmp.eq.s32.totalorder %s34, 7
      %p71 = por %p69, %p70
      %p73 = scmp.ne.s32.totalorder %s56, %s72
      %p74 = scmp.eq.s32.totalorder %s34, 0
      %p75 = por %p73, %p74
      %s76 = ssub.s32 %s36, %s43
      %s77 = ssub.s32 %s35, %s47
      %s78 = sor.u32 %s76, %s77
      %p79 = scmp.eq.s32.totalorder %s78, 0
      %s81 = sadd.s32 %s80, 1
      %s82 = scalar_select %p79, %s80, %s81
      %p85 = pneg %p79
      %p86 = scmp.eq.s32.totalorder %s28, 7
      %p87 = por %p85, %p86
      %p88 = scmp.ne.s32.totalorder %s80, %s83
      %p89 = scmp.eq.s32.totalorder %s28, 0
      %p90 = por %p88, %p89
      %p91 = scmp.ne.s32.totalorder %s80, %s83
      %p92 = scmp.eq.s32.totalorder %s33, 7
      %p93 = por %p91, %p92
      %p94 = scmp.ne.s32.totalorder %s83, %s84
      %p95 = scmp.eq.s32.totalorder %s33, 0
      %p96 = por %p94, %p95
      %p97 = scmp.ne.s32.totalorder %s83, %s84
      %p98 = scmp.eq.s32.totalorder %s34, 7
      %p99 = por %p97, %p98
      %p101 = scmp.ne.s32.totalorder %s84, %s100
      %p102 = scmp.eq.s32.totalorder %s34, 0
      %p103 = por %p101, %p102
      %s104 = ssub.s32 %s35, %s47
      %p105 = scmp.eq.s32.totalorder %s104, 0
      %s107 = sadd.s32 %s106, 1
      %s108 = scalar_select %p105, %s106, %s107
      %p111 = pneg %p105
      %p112 = scmp.eq.s32.totalorder %s28, 7
      %p113 = por %p111, %p112
      %p114 = scmp.ne.s32.totalorder %s106, %s109
      %p115 = scmp.eq.s32.totalorder %s28, 0
      %p116 = por %p114, %p115
      %p117 = scmp.ne.s32.totalorder %s106, %s109
      %p118 = scmp.eq.s32.totalorder %s33, 7
      %p119 = por %p117, %p118
      %p120 = scmp.ne.s32.totalorder %s109, %s110
      %p121 = scmp.eq.s32.totalorder %s33, 0
      %p122 = por %p120, %p121
      %p123 = scmp.ne.s32.totalorder %s109, %s110
      %p124 = scmp.eq.s32.totalorder %s34, 7
      %p125 = por %p123, %p124
      %p127 = scmp.ne.s32.totalorder %s110, %s126
      %p128 = scmp.eq.s32.totalorder %s34, 0
      %p129 = por %p127, %p128
      %s131 = sadd.s32 %s130, 1
      %p134 = scmp.eq.s32.totalorder %s28, 7
      %p135 = scmp.ne.s32.totalorder %s130, %s132
      %p136 = scmp.eq.s32.totalorder %s28, 0
      %p137 = por %p135, %p136
      %p138 = scmp.ne.s32.totalorder %s130, %s132
      %p139 = scmp.eq.s32.totalorder %s33, 7
      %p140 = por %p138, %p139
      %p141 = scmp.ne.s32.totalorder %s132, %s133
      %p142 = scmp.eq.s32.totalorder %s33, 0
      %p143 = por %p141, %p142
      %p144 = scmp.ne.s32.totalorder %s132, %s133
      %p145 = scmp.eq.s32.totalorder %s34, 7
      %p146 = por %p144, %p145
      %p148 = scmp.ne.s32.totalorder %s133, %s147
      %p149 = scmp.eq.s32.totalorder %s34, 0
      %p150 = por %p148, %p149
      %s152 = sadd.s32 %s151, 1
      %p155 = scmp.eq.s32.totalorder %s28, 7
      %p156 = scmp.ne.s32.totalorder %s151, %s153
      %p157 = scmp.eq.s32.totalorder %s28, 0
      %p158 = por %p156, %p157
      %p159 = scmp.ne.s32.totalorder %s151, %s153
      %p160 = scmp.eq.s32.totalorder %s33, 7
      %p161 = por %p159, %p160
      %p162 = scmp.ne.s32.totalorder %s153, %s154
      %p163 = scmp.eq.s32.totalorder %s33, 0
      %p164 = por %p162, %p163
      %p165 = scmp.ne.s32.totalorder %s153, %s154
      %p166 = scmp.eq.s32.totalorder %s34, 7
      %p167 = por %p165, %p166
      %p169 = scmp.ne.s32.totalorder %s154, %s168
      %p170 = scmp.eq.s32.totalorder %s34, 0
      %p171 = por %p169, %p170
      %s173 = sadd.s32 %s172, 1
      %p176 = scmp.eq.s32.totalorder %s28, 7
      %p177 = scmp.ne.s32.totalorder %s172, %s174
      %p178 = scmp.eq.s32.totalorder %s28, 0
      %p179 = por %p177, %p178
      %p180 = scmp.ne.s32.totalorder %s172, %s174
      %p181 = scmp.eq.s32.totalorder %s33, 7
      %p182 = por %p180, %p181
      %p183 = scmp.ne.s32.totalorder %s174, %s175
      %p184 = scmp.eq.s32.totalorder %s33, 0
      %p185 = por %p183, %p184
      %p186 = scmp.ne.s32.totalorder %s174, %s175
      %p187 = scmp.eq.s32.totalorder %s34, 7
      %p188 = por %p186, %p187
      %p190 = scmp.ne.s32.totalorder %s175, %s189
      %p191 = scmp.eq.s32.totalorder %s34, 0
      %p192 = por %p190, %p191
      %s194 = sadd.s32 %s193, 1
      %p197 = scmp.eq.s32.totalorder %s28, 7
      %p198 = scmp.ne.s32.totalorder %s193, %s195
      %p199 = scmp.eq.s32.totalorder %s28, 0
      %p200 = por %p198, %p199
      %p201 = scmp.ne.s32.totalorder %s193, %s195
      %p202 = scmp.eq.s32.totalorder %s33, 7
      %p203 = por %p201, %p202
      %p204 = scmp.ne.s32.totalorder %s195, %s196
      %p205 = scmp.eq.s32.totalorder %s33, 0
      %p206 = por %p204, %p205
      %p207 = scmp.ne.s32.totalorder %s195, %s196
      %p208 = scmp.eq.s32.totalorder %s34, 7
      %p209 = por %p207, %p208
      %p211 = scmp.ne.s32.totalorder %s196, %s210
      %p212 = scmp.eq.s32.totalorder %s34, 0
      %p213 = por %p211, %p212
      %s215 = sadd.s32 %s214, 1
      %p218 = scmp.eq.s32.totalorder %s28, 7
      %p219 = scmp.ne.s32.totalorder %s214, %s216
      %p220 = scmp.eq.s32.totalorder %s28, 0
      %p221 = por %p219, %p220
      %p222 = scmp.ne.s32.totalorder %s214, %s216
      %p223 = scmp.eq.s32.totalorder %s33, 7
      %p224 = por %p222, %p223
      %p225 = scmp.ne.s32.totalorder %s216, %s217
      %p226 = scmp.eq.s32.totalorder %s33, 0
      %p227 = por %p225, %p226
      %p228 = scmp.ne.s32.totalorder %s216, %s217
      %p229 = scmp.eq.s32.totalorder %s34, 7
      %p230 = por %p228, %p229
      %p232 = scmp.ne.s32.totalorder %s217, %s231
      %p233 = scmp.eq.s32.totalorder %s34, 0
      %p234 = por %p232, %p233
      %s235 = ssub.s32 %s36, %s43
      %s236 = ssub.s32 %s35, %s47
      %s237 = sor.u32 %s235, %s236
      %p238 = scmp.eq.s32.totalorder %s237, 0
      %s240 = sadd.s32 %s239, 1
      %s241 = scalar_select %p238, %s239, %s240
      %p244 = pneg %p238
      %p245 = scmp.eq.s32.totalorder %s28, 7
      %p246 = por %p244, %p245
      %p247 = scmp.ne.s32.totalorder %s239, %s242
      %p248 = scmp.eq.s32.totalorder %s28, 0
      %p249 = por %p247, %p248
      %p250 = scmp.ne.s32.totalorder %s239, %s242
      %p251 = scmp.eq.s32.totalorder %s33, 7
      %p252 = por %p250, %p251
      %p253 = scmp.ne.s32.totalorder %s242, %s243
      %p254 = scmp.eq.s32.totalorder %s33, 0
      %p255 = por %p253, %p254
      %p256 = scmp.ne.s32.totalorder %s242, %s243
      %p257 = scmp.eq.s32.totalorder %s34, 7
      %p258 = por %p256, %p257
      %p260 = scmp.ne.s32.totalorder %s243, %s259
      %p261 = scmp.eq.s32.totalorder %s34, 0
      %p262 = por %p260, %p261
      %s263 = ssub.s32 %s35, %s47
      %p264 = scmp.eq.s32.totalorder %s263, 0
      %s266 = sadd.s32 %s265, 1
      %s267 = scalar_select %p264, %s265, %s266
      %p270 = pneg %p264
      %p271 = scmp.eq.s32.totalorder %s28, 7
      %p272 = por %p270, %p271
      %p273 = scmp.ne.s32.totalorder %s265, %s268
      %p274 = scmp.eq.s32.totalorder %s28, 0
      %p275 = por %p273, %p274
      %p276 = scmp.ne.s32.totalorder %s265, %s268
      %p277 = scmp.eq.s32.totalorder %s33, 7
      %p278 = por %p276, %p277
      %p279 = scmp.ne.s32.totalorder %s268, %s269
      %p280 = scmp.eq.s32.totalorder %s33, 0
      %p281 = por %p279, %p280
      %p282 = scmp.ne.s32.totalorder %s268, %s269
      %p283 = scmp.eq.s32.totalorder %s34, 7
      %p284 = por %p282, %p283
      %p286 = scmp.ne.s32.totalorder %s269, %s285
      %p287 = scmp.eq.s32.totalorder %s34, 0
      %p288 = por %p286, %p287
      %p289 = scmp.le.s32.totalorder 1, %s28
      %p290 = scmp.lt.s32.totalorder %s28, 9
      %p291 = pnand %p289, %p290
      %p292 = pneg %p291
      // Predicated region
      $region9: #{tpu_custom_call.1} parent=5 // pred_check
        _
      $region10: #{tpu_custom_call.1} parent=5 // pred_check_branch
        %294 = sbr.rel (%p291) target = $region12
      $region11: #{tpu_custom_call.1} parent=5 // pred_region
        %s295 = ssub.s32 %s28, 1
        // Predicated region
        $region13: #{tpu_custom_call.1} parent=11 // pred_check
          %p296 = pneg %p122
        $region14: #{tpu_custom_call.1} parent=11 // pred_check_branch
          %298 = sbr.rel (%p296) target = $region16
        $region15: #{tpu_custom_call.1} parent=11 // pred_region
          %s300 = ssub.s32 128, 128
          %301 = vsyncadd [#allocation7], %s300
          %s302 = smul.addr %s37, 128
          %s303 = scalar_lea.hbm %s2, %s302
          %s305 = sshll.u32 [#allocation8], 4
          %s306 = int_to_ptr.vmem [resolvable:$true] %s305
          %308 = dma.hbm_to_vmem [thread:$0]  %s303, 128, %s306, [#allocation7]
        $region16: #{tpu_custom_call.1} parent=11 // pred_fallthru
          _
        // Predicated region
        $region17: #{tpu_custom_call.1} parent=11 // pred_check
          %p309 = pneg %p143
        $region18: #{tpu_custom_call.1} parent=11 // pred_check_branch
          %311 = sbr.rel (%p309) target = $region20
        $region19: #{tpu_custom_call.1} parent=11 // pred_region
          %s313 = ssub.s32 384, 384
          %314 = vsyncadd [#allocation10], %s313
          %s315 = sshll.u32 [#allocation9], 4
          %s316 = int_to_ptr.vmem [resolvable:$true] %s315
          %321 = dma.hbm_to_vmem [thread:$0]  %s3, 384, %s316, [#allocation10], 128, 128, 8
        $region20: #{tpu_custom_call.1} parent=11 // pred_fallthru
          _
        // Predicated region
        $region21: #{tpu_custom_call.1} parent=11 // pred_check
          %p322 = pneg %p164
        $region22: #{tpu_custom_call.1} parent=11 // pred_check_branch
          %324 = sbr.rel (%p322) target = $region24
        $region23: #{tpu_custom_call.1} parent=11 // pred_region
          %s326 = ssub.s32 128, 128
          %327 = vsyncadd [#allocation10], %s326
          %s329 = sshll.u32 [#allocation11], 4
          %s330 = int_to_ptr.vmem [resolvable:$true] %s329
          %332 = dma.hbm_to_vmem [thread:$0]  %s4, 128, %s330, [#allocation10]
        $region24: #{tpu_custom_call.1} parent=11 // pred_fallthru
          _
        // Predicated region
        $region25: #{tpu_custom_call.1} parent=11 // pred_check
          %p333 = pneg %p185
        $region26: #{tpu_custom_call.1} parent=11 // pred_check_branch
          %335 = sbr.rel (%p333) target = $region28
        $region27: #{tpu_custom_call.1} parent=11 // pred_region
          %s337 = ssub.s32 3072, 3072
          %338 = vsyncadd [#allocation13], %s337
          %s339 = sshll.u32 [#allocation12], 4
          %s340 = int_to_ptr.vmem [resolvable:$true] %s339
          %345 = dma.hbm_to_vmem [thread:$0]  %s5, 3072, %s340, [#allocation13], 128, 128, 8
        $region28: #{tpu_custom_call.1} parent=11 // pred_fallthru
          _
        // Predicated region
        $region29: #{tpu_custom_call.1} parent=11 // pred_check
          %p346 = pneg %p206
        $region30: #{tpu_custom_call.1} parent=11 // pred_check_branch
          %348 = sbr.rel (%p346) target = $region32
        $region31: #{tpu_custom_call.1} parent=11 // pred_region
          _
        $region32: #{tpu_custom_call.1} parent=11 // pred_fallthru
          _
        // Predicated region
        $region33: #{tpu_custom_call.1} parent=11 // pred_check
          %p349 = pneg %p227
        $region34: #{tpu_custom_call.1} parent=11 // pred_check_branch
          %351 = sbr.rel (%p349) target = $region36
        $region35: #{tpu_custom_call.1} parent=11 // pred_region
          %s353 = ssub.s32 512, 512
          %354 = vsyncadd [#allocation13], %s353
          %s355 = sshll.u32 [#allocation14], 4
          %s356 = int_to_ptr.vmem [resolvable:$true] %s355
          %361 = dma.hbm_to_vmem [thread:$0]  %s7, 512, %s356, [#allocation13], 128, 128, 8
        $region36: #{tpu_custom_call.1} parent=11 // pred_fallthru
          _
      $region12: #{tpu_custom_call.1} parent=5 // pred_fallthru
        _
      %p362 = scmp.lt.s32.totalorder %s28, 8
      // Predicated region
      $region37: #{tpu_custom_call.1} parent=5 // pred_check
        %p363 = pneg %p362
      $region38: #{tpu_custom_call.1} parent=5 // pred_check_branch
        %365 = sbr.rel (%p363) target = $region40
      $region39: #{tpu_custom_call.1} parent=5 // pred_region
        // Predicated region
        $region41: #{tpu_custom_call.1} parent=39 // pred_check
          %p366 = pneg %p62
        $region42: #{tpu_custom_call.1} parent=39 // pred_check_branch
          %368 = sbr.rel (%p366) target = $region44
        $region43: #{tpu_custom_call.1} parent=39 // pred_region
          %s369 = sand.u32 %s52, 1
          %s370 = scalar_lea.sflag [#allocation4], %s369
          %s371 = sand.u32 %s52, 1
          %s372 = smul.addr %s371, 8
          %s373 = scalar_lea.vmem [#allocation3], %s372
          %s375 = ssub.s32 128, 128
          %376 = vsyncadd %s370, %s375
          %s377 = sadd.s32 %s35, %s36
          %s378 = smul.addr %s377, 128
          %s379 = scalar_lea.hbm %s0, %s378
          %s381 = sshll.u32 %s373, 4
          %s382 = int_to_ptr.vmem [resolvable:$true] %s381
          %384 = dma.hbm_to_vmem [thread:$0]  %s379, 128, %s382, %s370
        $region44: #{tpu_custom_call.1} parent=39 // pred_fallthru
          _
        // Predicated region
        $region45: #{tpu_custom_call.1} parent=39 // pred_check
          %p385 = pneg %p90
        $region46: #{tpu_custom_call.1} parent=39 // pred_check_branch
          %387 = sbr.rel (%p385) target = $region48
        $region47: #{tpu_custom_call.1} parent=39 // pred_region
          %s388 = sand.u32 %s28, 1
          %s389 = scalar_lea.sflag [#allocation7], %s388
          %s390 = sand.u32 %s80, 1
          %s391 = smul.addr %s390, 8
          %s392 = scalar_lea.vmem [#allocation6], %s391
          %s394 = ssub.s32 128, 128
          %395 = vsyncadd %s389, %s394
          %s396 = sadd.s32 %s35, %s36
          %s397 = smul.addr %s396, 128
          %s398 = scalar_lea.hbm %s1, %s397
          %s400 = sshll.u32 %s392, 4
          %s401 = int_to_ptr.vmem [resolvable:$true] %s400
          %403 = dma.hbm_to_vmem [thread:$0]  %s398, 128, %s401, %s389
        $region48: #{tpu_custom_call.1} parent=39 // pred_fallthru
          _
      $region40: #{tpu_custom_call.1} parent=5 // pred_fallthru
        _
      %p404 = scmp.le.s32.totalorder 1, %s28
      %p405 = scmp.lt.s32.totalorder %s28, 9
      %p406 = pnand %p404, %p405
      %p407 = pneg %p406
      // Predicated region
      $region49: #{tpu_custom_call.1} parent=5 // pred_check
        _
      $region50: #{tpu_custom_call.1} parent=5 // pred_check_branch
        %409 = sbr.rel (%p406) target = $region52
      $region51: #{tpu_custom_call.1} parent=5 // pred_region
        %s410 = ssub.s32 %s28, 1
        %s411 = sand.u32 %s55, 1
        %s412 = scalar_lea.sflag [#allocation4], %s411
        %s413 = sand.u32 %s55, 1
        %s414 = smul.addr %s413, 8
        %s415 = scalar_lea.vmem [#allocation3], %s414
        // Predicated region
        $region53: #{tpu_custom_call.1} parent=51 // pred_check
          %p416 = pneg %p68
        $region54: #{tpu_custom_call.1} parent=51 // pred_check_branch
          %418 = sbr.rel (%p416) target = $region56
        $region55: #{tpu_custom_call.1} parent=51 // pred_region
          %419 = dma.done %s412, 128
        $region56: #{tpu_custom_call.1} parent=51 // pred_fallthru
          _
        %s420 = sand.u32 %s33, 1
        %s421 = scalar_lea.sflag [#allocation7], %s420
        %s422 = sand.u32 %s83, 1
        %s423 = smul.addr %s422, 8
        %s424 = scalar_lea.vmem [#allocation6], %s423
        // Predicated region
        $region57: #{tpu_custom_call.1} parent=51 // pred_check
          %p425 = pneg %p96
        $region58: #{tpu_custom_call.1} parent=51 // pred_check_branch
          %427 = sbr.rel (%p425) target = $region60
        $region59: #{tpu_custom_call.1} parent=51 // pred_region
          %428 = dma.done %s421, 128
        $region60: #{tpu_custom_call.1} parent=51 // pred_fallthru
          _
        // Predicated region
        $region61: #{tpu_custom_call.1} parent=51 // pred_check
          %p429 = pneg %p122
        $region62: #{tpu_custom_call.1} parent=51 // pred_check_branch
          %431 = sbr.rel (%p429) target = $region64
        $region63: #{tpu_custom_call.1} parent=51 // pred_region
          %432 = dma.done [#allocation7], 128
        $region64: #{tpu_custom_call.1} parent=51 // pred_fallthru
          _
        // Predicated region
        $region65: #{tpu_custom_call.1} parent=51 // pred_check
          %p433 = pneg %p143
        $region66: #{tpu_custom_call.1} parent=51 // pred_check_branch
          %435 = sbr.rel (%p433) target = $region68
        $region67: #{tpu_custom_call.1} parent=51 // pred_region
          %436 = dma.done [#allocation10], 384
        $region68: #{tpu_custom_call.1} parent=51 // pred_fallthru
          _
        // Predicated region
        $region69: #{tpu_custom_call.1} parent=51 // pred_check
          %p437 = pneg %p164
        $region70: #{tpu_custom_call.1} parent=51 // pred_check_branch
          %439 = sbr.rel (%p437) target = $region72
        $region71: #{tpu_custom_call.1} parent=51 // pred_region
          %440 = dma.done [#allocation10], 128
        $region72: #{tpu_custom_call.1} parent=51 // pred_fallthru
          _
        // Predicated region
        $region73: #{tpu_custom_call.1} parent=51 // pred_check
          %p441 = pneg %p185
        $region74: #{tpu_custom_call.1} parent=51 // pred_check_branch
          %443 = sbr.rel (%p441) target = $region76
        $region75: #{tpu_custom_call.1} parent=51 // pred_region
          %444 = dma.done [#allocation13], 3072
        $region76: #{tpu_custom_call.1} parent=51 // pred_fallthru
          _
        // Predicated region
        $region77: #{tpu_custom_call.1} parent=51 // pred_check
          %p445 = pneg %p227
        $region78: #{tpu_custom_call.1} parent=51 // pred_check_branch
          %447 = sbr.rel (%p445) target = $region80
        $region79: #{tpu_custom_call.1} parent=51 // pred_region
          %448 = dma.done [#allocation13], 512
        $region80: #{tpu_custom_call.1} parent=51 // pred_fallthru
          _
        %s449 = sand.u32 %s55, 1
        %s450 = scalar_lea.sflag [#allocation4], %s449
        %s451 = sand.u32 %s55, 1
        %s452 = smul.addr %s451, 8
        %s453 = scalar_lea.vmem [#allocation3], %s452
        %p454 = pneg %p68
        %p455 = pneg %p65
        %s456 = sand.u32 %s33, 1
        %s457 = scalar_lea.sflag [#allocation7], %s456
        %s458 = sand.u32 %s83, 1
        %s459 = smul.addr %s458, 8
        %s460 = scalar_lea.vmem [#allocation6], %s459
        %p461 = pneg %p96
        %p462 = pneg %p93
        %p463 = pneg %p122
        %p464 = pneg %p119
        %p465 = pneg %p143
        %p466 = pneg %p140
        %p467 = pneg %p164
        %p468 = pneg %p161
        %p469 = pneg %p185
        %p470 = pneg %p182
        %p471 = pneg %p206
        %p472 = pneg %p203
        %p473 = pneg %p227
        %p474 = pneg %p224
        %p475 = pneg %p255
        %p476 = pneg %p252
        %s477 = sand.u32 %s242, 1
        %s478 = scalar_lea.sflag [#allocation5], %s477
        %s479 = sand.u32 %s242, 1
        %s480 = smul.addr %s479, 8
        %s481 = scalar_lea.vmem [#allocation15], %s480
        %p482 = pneg %p281
        %p483 = pneg %p278
        %p484 = scmp.eq.s32.totalorder %s38, 0
        // Predicated region
        $region81: #{tpu_custom_call.1} parent=51 // pred_check
          %p485 = pneg %p484
        $region82: #{tpu_custom_call.1} parent=51 // pred_check_branch
          %487 = sbr.rel (%p485) target = $region84
        $region83: #{tpu_custom_call.1} parent=51 // pred_region
          %v488 = vld [vmem:[#allocation8] sm:$0xff]
          %vm489 = vcmask 261120
          %490 = vst.msk [vmem:[#allocation2] sm:$0xff] %vm489, %v488
        $region84: #{tpu_custom_call.1} parent=51 // pred_fallthru
          _
        %v491 = vld [vmem:[#allocation2] sm:$0xff]
        %v492 = vld [vmem:[%s415] sm:$0xff]
        %v493 = vld [vmem:[%s424] sm:$0xff]
        %v494 = vld [vmem:[#allocation9] sm:$0xff]
        %v495 = vld [vmem:[#allocation9 + $0x8] sm:$0xff]
        %v496 = vld [vmem:[#allocation9 + $0x10] sm:$0xff]
        %v497 = vld [vmem:[#allocation11] sm:$0xff]
        %vm498 = vcmask 64512
        %v500 = vsel %vm498, %v493, 0
        %502 = vmatprep.subr.mxu0 0.0
        %503 = vmatpush1.msra.mxu0 0.0
        %504 = vmatprep.subr.mxu0 0.0
        %505 = vmatpush1.msra.mxu0 0.0
        %506 = vmatprep.subr.mxu0 0.0
        %507 = vmatpush1.msra.mxu0 0.0
        %508 = vmatprep.subr.mxu0 0.0
        %509 = vmatpush1.msra.mxu0 0.0
        %510 = vmatprep.subr.mxu0 0.0
        %511 = vmatpush1.msra.mxu0 0.0
        %512 = vmatprep.subr.mxu0 0.0
        %513 = vmatpush1.msra.mxu0 0.0
        %514 = vmatprep.subr.mxu0 0.0
        %515 = vmatpush1.msra.mxu0 0.0
        %516 = vmatprep.subr.mxu0 0.0
        %517 = vmatpush1.msra.mxu0 0.0
        %518 = vmatprep.subr.mxu0 0.0
        %519 = vmatpush1.msra.mxu0 0.0
        %520 = vmatprep.subr.mxu0 0.0
        %521 = vmatpush1.msra.mxu0 0.0
        %522 = vmatprep.subr.mxu0 0.0
        %523 = vmatpush1.msra.mxu0 0.0
        %524 = vmatprep.subr.mxu0 0.0
        %525 = vmatpush1.msra.mxu0 0.0
        %526 = vmatprep.subr.mxu0 0.0
        %527 = vmatpush1.msra.mxu0 0.0
        %528 = vmatprep.subr.mxu0 0.0
        %529 = vmatpush1.msra.mxu0 0.0
        %530 = vmatprep.subr.mxu0 0.0
        %531 = vmatpush1.msra.mxu0 0.0
        %532 = vmatprep.subr.mxu0 0.0
        %533 = vmatpush1.msra.mxu0 %v497
        %534 = vmatprep.subr.mxu0 0.0
        %535 = vmatpush2.msra.mxu0 0.0
        %536 = vmatprep.subr.mxu0 0.0
        %537 = vmatpush2.msra.mxu0 0.0
        %538 = vmatprep.subr.mxu0 0.0
        %539 = vmatpush2.msra.mxu0 0.0
        %540 = vmatprep.subr.mxu0 0.0
        %541 = vmatpush2.msra.mxu0 0.0
        %542 = vmatprep.subr.mxu0 0.0
        %543 = vmatpush2.msra.mxu0 0.0
        %544 = vmatprep.subr.mxu0 0.0
        %545 = vmatpush2.msra.mxu0 0.0
        %546 = vmatprep.subr.mxu0 0.0
        %547 = vmatpush2.msra.mxu0 0.0
        %548 = vmatprep.subr.mxu0 0.0
        %549 = vmatpush2.msra.mxu0 0.0
        %550 = vmatprep.subr.mxu0 0.0
        %551 = vmatpush2.msra.mxu0 0.0
        %552 = vmatprep.subr.mxu0 0.0
        %553 = vmatpush2.msra.mxu0 0.0
        %554 = vmatprep.subr.mxu0 0.0
        %555 = vmatpush2.msra.mxu0 0.0
        %556 = vmatprep.subr.mxu0 0.0
        %557 = vmatpush2.msra.mxu0 0.0
        %558 = vmatprep.subr.mxu0 0.0
        %559 = vmatpush2.msra.mxu0 0.0
        %560 = vmatprep.subr.mxu0 0.0
        %561 = vmatpush2.msra.mxu0 0.0
        %562 = vmatprep.subr.mxu0 0.0
        %563 = vmatpush2.msra.mxu0 0.0
        %564 = vmatprep.subr.mxu0 0.0
        %565 = vmatpush2.msra.mxu0 0.0
        %566 = vmatprep.mubr.f32.mxu0 0.0
        %567 = vmatmul.mubr.f32.gmra.mxu0 %v500
        %v568 = vpop.f32.mrf.mxu0
        %v569 = vadd.f32 0.0, %v568
        %v570 = vpop.f32.mrf.mxu0
        %571 = vdwg.mxu0
        %vm572 = vcmask 195584
        %v574 = vsel %vm572, %v492, 0
        %576 = vmatprep.subr.mxu0 0.0
        %577 = vmatpush1.msra.mxu0 0.0
        %578 = vmatprep.subr.mxu0 0.0
        %579 = vmatpush1.msra.mxu0 0.0
        %580 = vmatprep.subr.mxu0 0.0
        %581 = vmatpush1.msra.mxu0 0.0
        %582 = vmatprep.subr.mxu0 0.0
        %583 = vmatpush1.msra.mxu0 0.0
        %584 = vmatprep.subr.mxu0 0.0
        %585 = vmatpush1.msra.mxu0 0.0
        %586 = vmatprep.subr.mxu0 0.0
        %587 = vmatpush1.msra.mxu0 0.0
        %588 = vmatprep.subr.mxu0 0.0
        %589 = vmatpush1.msra.mxu0 0.0
        %590 = vmatprep.subr.mxu0 0.0
        %591 = vmatpush1.msra.mxu0 0.0
        %592 = vmatprep.subr.mxu0 0.0
        %593 = vmatpush1.msra.mxu0 0.0
        %594 = vmatprep.subr.mxu0 0.0
        %595 = vmatpush1.msra.mxu0 0.0
        %596 = vmatprep.subr.mxu0 0.0
        %597 = vmatpush1.msra.mxu0 0.0
        %598 = vmatprep.subr.mxu0 0.0
        %599 = vmatpush1.msra.mxu0 0.0
        %600 = vmatprep.subr.mxu0 0.0
        %601 = vmatpush1.msra.mxu0 0.0
        %602 = vmatprep.subr.mxu0 0.0
        %603 = vmatpush1.msra.mxu0 %v496
        %604 = vmatprep.subr.mxu0 0.0
        %605 = vmatpush1.msra.mxu0 %v495
        %606 = vmatprep.subr.mxu0 0.0
        %607 = vmatpush1.msra.mxu0 %v494
        %608 = vmatprep.subr.mxu0 0.0
        %609 = vmatpush2.msra.mxu0 0.0
        %610 = vmatprep.subr.mxu0 0.0
        %611 = vmatpush2.msra.mxu0 0.0
        %612 = vmatprep.subr.mxu0 0.0
        %613 = vmatpush2.msra.mxu0 0.0
        %614 = vmatprep.subr.mxu0 0.0
        %615 = vmatpush2.msra.mxu0 0.0
        %616 = vmatprep.subr.mxu0 0.0
        %617 = vmatpush2.msra.mxu0 0.0
        %618 = vmatprep.subr.mxu0 0.0
        %619 = vmatpush2.msra.mxu0 0.0
        %620 = vmatprep.subr.mxu0 0.0
        %621 = vmatpush2.msra.mxu0 0.0
        %622 = vmatprep.subr.mxu0 0.0
        %623 = vmatpush2.msra.mxu0 0.0
        %624 = vmatprep.subr.mxu0 0.0
        %625 = vmatpush2.msra.mxu0 0.0
        %626 = vmatprep.subr.mxu0 0.0
        %627 = vmatpush2.msra.mxu0 0.0
        %628 = vmatprep.subr.mxu0 0.0
        %629 = vmatpush2.msra.mxu0 0.0
        %630 = vmatprep.subr.mxu0 0.0
        %631 = vmatpush2.msra.mxu0 0.0
        %632 = vmatprep.subr.mxu0 0.0
        %633 = vmatpush2.msra.mxu0 0.0
        %634 = vmatprep.subr.mxu0 0.0
        %635 = vmatpush2.msra.mxu0 0.0
        %636 = vmatprep.subr.mxu0 0.0
        %637 = vmatpush2.msra.mxu0 0.0
        %638 = vmatprep.subr.mxu0 0.0
        %639 = vmatpush2.msra.mxu0 0.0
        %640 = vmatprep.mubr.f32.mxu0 0.0
        %641 = vmatmul.mubr.f32.gmra.mxu0 %v574
        %v642 = vpop.f32.mrf.mxu0
        %v643 = vadd.f32 %v569, %v642
        %v644 = vpop.f32.mrf.mxu0
        %645 = vdwg.mxu0
        %v646 = vld [vmem:[%s6] sm:$0x1]
        %v647 = vlaneseq
        %v648 = vshrl.u32 %v647, 7
        %v649 = vsub.s32 0, %v648
        %v650 = vrot.slane %v646, %v649
        %v651 = vadd.f32 %v643, %v650
        %v652 = vmax.f32 %v651, 0.0
        %v653 = vld [vmem:[#allocation12] sm:$0xff]
        %v654 = vld [vmem:[#allocation12 + $0x8] sm:$0xff]
        %v655 = vld [vmem:[#allocation12 + $0x10] sm:$0xff]
        %v656 = vld [vmem:[#allocation12 + $0x18] sm:$0xff]
        %s657 = scalar_lea.vmem [#allocation12], 32
        %v658 = vld [vmem:[%s657] sm:$0xff]
        %v659 = vld [vmem:[%s657 + $0x8] sm:$0xff]
        %v660 = vld [vmem:[%s657 + $0x10] sm:$0xff]
        %v661 = vld [vmem:[%s657 + $0x18] sm:$0xff]
        %s662 = scalar_lea.vmem [#allocation12], 64
        %v663 = vld [vmem:[%s662] sm:$0xff]
        %v664 = vld [vmem:[%s662 + $0x8] sm:$0xff]
        %v665 = vld [vmem:[%s662 + $0x10] sm:$0xff]
        %v666 = vld [vmem:[%s662 + $0x18] sm:$0xff]
        %v667 = vld [vmem:[%s6 + $0x3] sm:$0x1]
        %v668 = vlaneseq
        %v669 = vshrl.u32 %v668, 7
        %v670 = vsub.s32 0, %v669
        %v671 = vrot.slane %v667, %v670
        %vm672 = vcmask 261120
        %v674 = vsel %vm672, %v652, 0
        %676 = vmatprep.subr.mxu0 0.0
        %677 = vmatpush1.msra.mxu0 0.0
        %678 = vmatprep.subr.mxu0 0.0
        %679 = vmatpush1.msra.mxu0 0.0
        %680 = vmatprep.subr.mxu0 0.0
        %681 = vmatpush1.msra.mxu0 0.0
        %682 = vmatprep.subr.mxu0 0.0
        %683 = vmatpush1.msra.mxu0 0.0
        %684 = vmatprep.subr.mxu0 0.0
        %685 = vmatpush1.msra.mxu0 0.0
        %686 = vmatprep.subr.mxu0 0.0
        %687 = vmatpush1.msra.mxu0 0.0
        %688 = vmatprep.subr.mxu0 0.0
        %689 = vmatpush1.msra.mxu0 0.0
        %690 = vmatprep.subr.mxu0 0.0
        %691 = vmatpush1.msra.mxu0 0.0
        %692 = vmatprep.subr.mxu0 0.0
        %693 = vmatpush1.msra.mxu0 0.0
        %694 = vmatprep.subr.mxu0 0.0
        %695 = vmatpush1.msra.mxu0 0.0
        %696 = vmatprep.subr.mxu0 0.0
        %697 = vmatpush1.msra.mxu0 0.0
        %698 = vmatprep.subr.mxu0 0.0
        %699 = vmatpush1.msra.mxu0 0.0
        %700 = vmatprep.subr.mxu0 0.0
        %701 = vmatpush1.msra.mxu0 %v666
        %702 = vmatprep.subr.mxu0 0.0
        %703 = vmatpush1.msra.mxu0 %v665
        %704 = vmatprep.subr.mxu0 0.0
        %705 = vmatpush1.msra.mxu0 %v664
        %706 = vmatprep.subr.mxu0 0.0
        %707 = vmatpush1.msra.mxu0 %v663
        %708 = vmatprep.subr.mxu0 0.0
        %709 = vmatpush2.msra.mxu0 0.0
        %710 = vmatprep.subr.mxu0 0.0
        %711 = vmatpush2.msra.mxu0 0.0
        %712 = vmatprep.subr.mxu0 0.0
        %713 = vmatpush2.msra.mxu0 0.0
        %714 = vmatprep.subr.mxu0 0.0
        %715 = vmatpush2.msra.mxu0 0.0
        %716 = vmatprep.subr.mxu0 0.0
        %717 = vmatpush2.msra.mxu0 0.0
        %718 = vmatprep.subr.mxu0 0.0
        %719 = vmatpush2.msra.mxu0 0.0
        %720 = vmatprep.subr.mxu0 0.0
        %721 = vmatpush2.msra.mxu0 0.0
        %722 = vmatprep.subr.mxu0 0.0
        %723 = vmatpush2.msra.mxu0 0.0
        %724 = vmatprep.subr.mxu0 0.0
        %725 = vmatpush2.msra.mxu0 0.0
        %726 = vmatprep.subr.mxu0 0.0
        %727 = vmatpush2.msra.mxu0 0.0
        %728 = vmatprep.subr.mxu0 0.0
        %729 = vmatpush2.msra.mxu0 0.0
        %730 = vmatprep.subr.mxu0 0.0
        %731 = vmatpush2.msra.mxu0 0.0
        %732 = vmatprep.subr.mxu0 0.0
        %733 = vmatpush2.msra.mxu0 0.0
        %734 = vmatprep.subr.mxu0 0.0
        %735 = vmatpush2.msra.mxu0 0.0
        %736 = vmatprep.subr.mxu0 0.0
        %737 = vmatpush2.msra.mxu0 0.0
        %738 = vmatprep.subr.mxu0 0.0
        %739 = vmatpush2.msra.mxu0 0.0
        %740 = vmatprep.mubr.f32.mxu0 0.0
        %741 = vmatmul.mubr.f32.gmra.mxu0 %v674
        %v742 = vpop.f32.mrf.mxu0
        %v743 = vadd.f32 %v671, %v742
        %v744 = vpop.f32.mrf.mxu0
        %745 = vdwg.mxu0
        %s746 = scalar_lea.vmem [#allocation12], 96
        %v747 = vld [vmem:[%s746] sm:$0xff]
        %v748 = vld [vmem:[%s746 + $0x8] sm:$0xff]
        %v749 = vld [vmem:[%s746 + $0x10] sm:$0xff]
        %v750 = vld [vmem:[%s746 + $0x18] sm:$0xff]
        %v752 = vsel %vm672, %v491, 0
        %754 = vmatprep.subr.mxu0 0.0
        %755 = vmatpush1.msra.mxu0 0.0
        %756 = vmatprep.subr.mxu0 0.0
        %757 = vmatpush1.msra.mxu0 0.0
        %758 = vmatprep.subr.mxu0 0.0
        %759 = vmatpush1.msra.mxu0 0.0
        %760 = vmatprep.subr.mxu0 0.0
        %761 = vmatpush1.msra.mxu0 0.0
        %762 = vmatprep.subr.mxu0 0.0
        %763 = vmatpush1.msra.mxu0 0.0
        %764 = vmatprep.subr.mxu0 0.0
        %765 = vmatpush1.msra.mxu0 0.0
        %766 = vmatprep.subr.mxu0 0.0
        %767 = vmatpush1.msra.mxu0 0.0
        %768 = vmatprep.subr.mxu0 0.0
        %769 = vmatpush1.msra.mxu0 0.0
        %770 = vmatprep.subr.mxu0 0.0
        %771 = vmatpush1.msra.mxu0 0.0
        %772 = vmatprep.subr.mxu0 0.0
        %773 = vmatpush1.msra.mxu0 0.0
        %774 = vmatprep.subr.mxu0 0.0
        %775 = vmatpush1.msra.mxu0 0.0
        %776 = vmatprep.subr.mxu0 0.0
        %777 = vmatpush1.msra.mxu0 0.0
        %778 = vmatprep.subr.mxu0 0.0
        %779 = vmatpush1.msra.mxu0 %v750
        %780 = vmatprep.subr.mxu0 0.0
        %781 = vmatpush1.msra.mxu0 %v749
        %782 = vmatprep.subr.mxu0 0.0
        %783 = vmatpush1.msra.mxu0 %v748
        %784 = vmatprep.subr.mxu0 0.0
        %785 = vmatpush1.msra.mxu0 %v747
        %786 = vmatprep.subr.mxu0 0.0
        %787 = vmatpush2.msra.mxu0 0.0
        %788 = vmatprep.subr.mxu0 0.0
        %789 = vmatpush2.msra.mxu0 0.0
        %790 = vmatprep.subr.mxu0 0.0
        %791 = vmatpush2.msra.mxu0 0.0
        %792 = vmatprep.subr.mxu0 0.0
        %793 = vmatpush2.msra.mxu0 0.0
        %794 = vmatprep.subr.mxu0 0.0
        %795 = vmatpush2.msra.mxu0 0.0
        %796 = vmatprep.subr.mxu0 0.0
        %797 = vmatpush2.msra.mxu0 0.0
        %798 = vmatprep.subr.mxu0 0.0
        %799 = vmatpush2.msra.mxu0 0.0
        %800 = vmatprep.subr.mxu0 0.0
        %801 = vmatpush2.msra.mxu0 0.0
        %802 = vmatprep.subr.mxu0 0.0
        %803 = vmatpush2.msra.mxu0 0.0
        %804 = vmatprep.subr.mxu0 0.0
        %805 = vmatpush2.msra.mxu0 0.0
        %806 = vmatprep.subr.mxu0 0.0
        %807 = vmatpush2.msra.mxu0 0.0
        %808 = vmatprep.subr.mxu0 0.0
        %809 = vmatpush2.msra.mxu0 0.0
        %810 = vmatprep.subr.mxu0 0.0
        %811 = vmatpush2.msra.mxu0 0.0
        %812 = vmatprep.subr.mxu0 0.0
        %813 = vmatpush2.msra.mxu0 0.0
        %814 = vmatprep.subr.mxu0 0.0
        %815 = vmatpush2.msra.mxu0 0.0
        %816 = vmatprep.subr.mxu0 0.0
        %817 = vmatpush2.msra.mxu0 0.0
        %818 = vmatprep.mubr.f32.mxu0 0.0
        %819 = vmatmul.mubr.f32.gmra.mxu0 %v752
        %v820 = vpop.f32.mrf.mxu0
        %v821 = vadd.f32 0.0, %v820
        %v822 = vpop.f32.mrf.mxu0
        %823 = vdwg.mxu0
        %s824 = scalar_lea.vmem [#allocation12], 128
        %v825 = vld [vmem:[%s824] sm:$0xff]
        %v826 = vld [vmem:[%s824 + $0x8] sm:$0xff]
        %v827 = vld [vmem:[%s824 + $0x10] sm:$0xff]
        %v828 = vld [vmem:[%s824 + $0x18] sm:$0xff]
        %829 = vmatprep.subr.mxu0 0.0
        %830 = vmatpush1.msra.mxu0 0.0
        %831 = vmatprep.subr.mxu0 0.0
        %832 = vmatpush1.msra.mxu0 0.0
        %833 = vmatprep.subr.mxu0 0.0
        %834 = vmatpush1.msra.mxu0 0.0
        %835 = vmatprep.subr.mxu0 0.0
        %836 = vmatpush1.msra.mxu0 0.0
        %837 = vmatprep.subr.mxu0 0.0
        %838 = vmatpush1.msra.mxu0 0.0
        %839 = vmatprep.subr.mxu0 0.0
        %840 = vmatpush1.msra.mxu0 0.0
        %841 = vmatprep.subr.mxu0 0.0
        %842 = vmatpush1.msra.mxu0 0.0
        %843 = vmatprep.subr.mxu0 0.0
        %844 = vmatpush1.msra.mxu0 0.0
        %845 = vmatprep.subr.mxu0 0.0
        %846 = vmatpush1.msra.mxu0 0.0
        %847 = vmatprep.subr.mxu0 0.0
        %848 = vmatpush1.msra.mxu0 0.0
        %849 = vmatprep.subr.mxu0 0.0
        %850 = vmatpush1.msra.mxu0 0.0
        %851 = vmatprep.subr.mxu0 0.0
        %852 = vmatpush1.msra.mxu0 0.0
        %853 = vmatprep.subr.mxu0 0.0
        %854 = vmatpush1.msra.mxu0 %v828
        %855 = vmatprep.subr.mxu0 0.0
        %856 = vmatpush1.msra.mxu0 %v827
        %857 = vmatprep.subr.mxu0 0.0
        %858 = vmatpush1.msra.mxu0 %v826
        %859 = vmatprep.subr.mxu0 0.0
        %860 = vmatpush1.msra.mxu0 %v825
        %861 = vmatprep.subr.mxu0 0.0
        %862 = vmatpush2.msra.mxu0 0.0
        %863 = vmatprep.subr.mxu0 0.0
        %864 = vmatpush2.msra.mxu0 0.0
        %865 = vmatprep.subr.mxu0 0.0
        %866 = vmatpush2.msra.mxu0 0.0
        %867 = vmatprep.subr.mxu0 0.0
        %868 = vmatpush2.msra.mxu0 0.0
        %869 = vmatprep.subr.mxu0 0.0
        %870 = vmatpush2.msra.mxu0 0.0
        %871 = vmatprep.subr.mxu0 0.0
        %872 = vmatpush2.msra.mxu0 0.0
        %873 = vmatprep.subr.mxu0 0.0
        %874 = vmatpush2.msra.mxu0 0.0
        %875 = vmatprep.subr.mxu0 0.0
        %876 = vmatpush2.msra.mxu0 0.0
        %877 = vmatprep.subr.mxu0 0.0
        %878 = vmatpush2.msra.mxu0 0.0
        %879 = vmatprep.subr.mxu0 0.0
        %880 = vmatpush2.msra.mxu0 0.0
        %881 = vmatprep.subr.mxu0 0.0
        %882 = vmatpush2.msra.mxu0 0.0
        %883 = vmatprep.subr.mxu0 0.0
        %884 = vmatpush2.msra.mxu0 0.0
        %885 = vmatprep.subr.mxu0 0.0
        %886 = vmatpush2.msra.mxu0 0.0
        %887 = vmatprep.subr.mxu0 0.0
        %888 = vmatpush2.msra.mxu0 0.0
        %889 = vmatprep.subr.mxu0 0.0
        %890 = vmatpush2.msra.mxu0 0.0
        %891 = vmatprep.subr.mxu0 0.0
        %892 = vmatpush2.msra.mxu0 0.0
        %893 = vmatprep.mubr.f32.mxu0 0.0
        %894 = vmatmul.mubr.f32.gmra.mxu0 %v752
        %v895 = vpop.f32.mrf.mxu0
        %v896 = vadd.f32 0.0, %v895
        %v897 = vpop.f32.mrf.mxu0
        %898 = vdwg.mxu0
        %s899 = scalar_lea.vmem [#allocation12], 160
        %v900 = vld [vmem:[%s899] sm:$0xff]
        %v901 = vld [vmem:[%s899 + $0x8] sm:$0xff]
        %v902 = vld [vmem:[%s899 + $0x10] sm:$0xff]
        %v903 = vld [vmem:[%s899 + $0x18] sm:$0xff]
        %v904 = vld [vmem:[%s6 + $0x4] sm:$0x1]
        %v905 = vlaneseq
        %v906 = vshrl.u32 %v905, 7
        %v907 = vsub.s32 0, %v906
        %v908 = vrot.slane %v904, %v907
        %909 = vmatprep.subr.mxu0 0.0
        %910 = vmatpush1.msra.mxu0 0.0
        %911 = vmatprep.subr.mxu0 0.0
        %912 = vmatpush1.msra.mxu0 0.0
        %913 = vmatprep.subr.mxu0 0.0
        %914 = vmatpush1.msra.mxu0 0.0
        %915 = vmatprep.subr.mxu0 0.0
        %916 = vmatpush1.msra.mxu0 0.0
        %917 = vmatprep.subr.mxu0 0.0
        %918 = vmatpush1.msra.mxu0 0.0
        %919 = vmatprep.subr.mxu0 0.0
        %920 = vmatpush1.msra.mxu0 0.0
        %921 = vmatprep.subr.mxu0 0.0
        %922 = vmatpush1.msra.mxu0 0.0
        %923 = vmatprep.subr.mxu0 0.0
        %924 = vmatpush1.msra.mxu0 0.0
        %925 = vmatprep.subr.mxu0 0.0
        %926 = vmatpush1.msra.mxu0 0.0
        %927 = vmatprep.subr.mxu0 0.0
        %928 = vmatpush1.msra.mxu0 0.0
        %929 = vmatprep.subr.mxu0 0.0
        %930 = vmatpush1.msra.mxu0 0.0
        %931 = vmatprep.subr.mxu0 0.0
        %932 = vmatpush1.msra.mxu0 0.0
        %933 = vmatprep.subr.mxu0 0.0
        %934 = vmatpush1.msra.mxu0 %v903
        %935 = vmatprep.subr.mxu0 0.0
        %936 = vmatpush1.msra.mxu0 %v902
        %937 = vmatprep.subr.mxu0 0.0
        %938 = vmatpush1.msra.mxu0 %v901
        %939 = vmatprep.subr.mxu0 0.0
        %940 = vmatpush1.msra.mxu0 %v900
        %941 = vmatprep.subr.mxu0 0.0
        %942 = vmatpush2.msra.mxu0 0.0
        %943 = vmatprep.subr.mxu0 0.0
        %944 = vmatpush2.msra.mxu0 0.0
        %945 = vmatprep.subr.mxu0 0.0
        %946 = vmatpush2.msra.mxu0 0.0
        %947 = vmatprep.subr.mxu0 0.0
        %948 = vmatpush2.msra.mxu0 0.0
        %949 = vmatprep.subr.mxu0 0.0
        %950 = vmatpush2.msra.mxu0 0.0
        %951 = vmatprep.subr.mxu0 0.0
        %952 = vmatpush2.msra.mxu0 0.0
        %953 = vmatprep.subr.mxu0 0.0
        %954 = vmatpush2.msra.mxu0 0.0
        %955 = vmatprep.subr.mxu0 0.0
        %956 = vmatpush2.msra.mxu0 0.0
        %957 = vmatprep.subr.mxu0 0.0
        %958 = vmatpush2.msra.mxu0 0.0
        %959 = vmatprep.subr.mxu0 0.0
        %960 = vmatpush2.msra.mxu0 0.0
        %961 = vmatprep.subr.mxu0 0.0
        %962 = vmatpush2.msra.mxu0 0.0
        %963 = vmatprep.subr.mxu0 0.0
        %964 = vmatpush2.msra.mxu0 0.0
        %965 = vmatprep.subr.mxu0 0.0
        %966 = vmatpush2.msra.mxu0 0.0
        %967 = vmatprep.subr.mxu0 0.0
        %968 = vmatpush2.msra.mxu0 0.0
        %969 = vmatprep.subr.mxu0 0.0
        %970 = vmatpush2.msra.mxu0 0.0
        %971 = vmatprep.subr.mxu0 0.0
        %972 = vmatpush2.msra.mxu0 0.0
        %973 = vmatprep.mubr.f32.mxu0 0.0
        %974 = vmatmul.mubr.f32.gmra.mxu0 %v752
        %v975 = vpop.f32.mrf.mxu0
        %v976 = vadd.f32 %v908, %v975
        %v977 = vpop.f32.mrf.mxu0
        %978 = vdwg.mxu0
        %979 = vmatprep.subr.mxu0 0.0
        %980 = vmatpush1.msra.mxu0 0.0
        %981 = vmatprep.subr.mxu0 0.0
        %982 = vmatpush1.msra.mxu0 0.0
        %983 = vmatprep.subr.mxu0 0.0
        %984 = vmatpush1.msra.mxu0 0.0
        %985 = vmatprep.subr.mxu0 0.0
        %986 = vmatpush1.msra.mxu0 0.0
        %987 = vmatprep.subr.mxu0 0.0
        %988 = vmatpush1.msra.mxu0 0.0
        %989 = vmatprep.subr.mxu0 0.0
        %990 = vmatpush1.msra.mxu0 0.0
        %991 = vmatprep.subr.mxu0 0.0
        %992 = vmatpush1.msra.mxu0 0.0
        %993 = vmatprep.subr.mxu0 0.0
        %994 = vmatpush1.msra.mxu0 0.0
        %995 = vmatprep.subr.mxu0 0.0
        %996 = vmatpush1.msra.mxu0 0.0
        %997 = vmatprep.subr.mxu0 0.0
        %998 = vmatpush1.msra.mxu0 0.0
        %999 = vmatprep.subr.mxu0 0.0
        %1000 = vmatpush1.msra.mxu0 0.0
        %1001 = vmatprep.subr.mxu0 0.0
        %1002 = vmatpush1.msra.mxu0 0.0
        %1003 = vmatprep.subr.mxu0 0.0
        %1004 = vmatpush1.msra.mxu0 %v656
        %1005 = vmatprep.subr.mxu0 0.0
        %1006 = vmatpush1.msra.mxu0 %v655
        %1007 = vmatprep.subr.mxu0 0.0
        %1008 = vmatpush1.msra.mxu0 %v654
        %1009 = vmatprep.subr.mxu0 0.0
        %1010 = vmatpush1.msra.mxu0 %v653
        %1011 = vmatprep.subr.mxu0 0.0
        %1012 = vmatpush2.msra.mxu0 0.0
        %1013 = vmatprep.subr.mxu0 0.0
        %1014 = vmatpush2.msra.mxu0 0.0
        %1015 = vmatprep.subr.mxu0 0.0
        %1016 = vmatpush2.msra.mxu0 0.0
        %1017 = vmatprep.subr.mxu0 0.0
        %1018 = vmatpush2.msra.mxu0 0.0
        %1019 = vmatprep.subr.mxu0 0.0
        %1020 = vmatpush2.msra.mxu0 0.0
        %1021 = vmatprep.subr.mxu0 0.0
        %1022 = vmatpush2.msra.mxu0 0.0
        %1023 = vmatprep.subr.mxu0 0.0
        %1024 = vmatpush2.msra.mxu0 0.0
        %1025 = vmatprep.subr.mxu0 0.0
        %1026 = vmatpush2.msra.mxu0 0.0
        %1027 = vmatprep.subr.mxu0 0.0
        %1028 = vmatpush2.msra.mxu0 0.0
        %1029 = vmatprep.subr.mxu0 0.0
        %1030 = vmatpush2.msra.mxu0 0.0
        %1031 = vmatprep.subr.mxu0 0.0
        %1032 = vmatpush2.msra.mxu0 0.0
        %1033 = vmatprep.subr.mxu0 0.0
        %1034 = vmatpush2.msra.mxu0 0.0
        %1035 = vmatprep.subr.mxu0 0.0
        %1036 = vmatpush2.msra.mxu0 0.0
        %1037 = vmatprep.subr.mxu0 0.0
        %1038 = vmatpush2.msra.mxu0 0.0
        %1039 = vmatprep.subr.mxu0 0.0
        %1040 = vmatpush2.msra.mxu0 0.0
        %1041 = vmatprep.subr.mxu0 0.0
        %1042 = vmatpush2.msra.mxu0 0.0
        %1043 = vmatprep.mubr.f32.mxu0 0.0
        %1044 = vmatmul.mubr.f32.gmra.mxu0 %v674
        %v1045 = vpop.f32.mrf.mxu0
        %v1046 = vadd.f32 %v821, %v1045
        %v1047 = vpop.f32.mrf.mxu0
        %1048 = vdwg.mxu0
        %v1049 = vld [vmem:[%s6 + $0x1] sm:$0x1]
        %v1050 = vlaneseq
        %v1051 = vshrl.u32 %v1050, 7
        %v1052 = vsub.s32 0, %v1051
        %v1053 = vrot.slane %v1049, %v1052
        %v1054 = vadd.f32 %v1046, %v1053
        %v1055 = vxor.u32 %v1054, 2147483648
        %v1056 = vmul.f32 %v1055, 1.442695
        %v1057 = vpow.pop %v1056
        %v1058 = vadd.f32 %v1057, 1.0
        %v1059 = vrcp.pop %v1058
        %v1060 = vmul.f32 1.0, %v1059
        %1061 = vmatprep.subr.mxu0 0.0
        %1062 = vmatpush1.msra.mxu0 0.0
        %1063 = vmatprep.subr.mxu0 0.0
        %1064 = vmatpush1.msra.mxu0 0.0
        %1065 = vmatprep.subr.mxu0 0.0
        %1066 = vmatpush1.msra.mxu0 0.0
        %1067 = vmatprep.subr.mxu0 0.0
        %1068 = vmatpush1.msra.mxu0 0.0
        %1069 = vmatprep.subr.mxu0 0.0
        %1070 = vmatpush1.msra.mxu0 0.0
        %1071 = vmatprep.subr.mxu0 0.0
        %1072 = vmatpush1.msra.mxu0 0.0
        %1073 = vmatprep.subr.mxu0 0.0
        %1074 = vmatpush1.msra.mxu0 0.0
        %1075 = vmatprep.subr.mxu0 0.0
        %1076 = vmatpush1.msra.mxu0 0.0
        %1077 = vmatprep.subr.mxu0 0.0
        %1078 = vmatpush1.msra.mxu0 0.0
        %1079 = vmatprep.subr.mxu0 0.0
        %1080 = vmatpush1.msra.mxu0 0.0
        %1081 = vmatprep.subr.mxu0 0.0
        %1082 = vmatpush1.msra.mxu0 0.0
        %1083 = vmatprep.subr.mxu0 0.0
        %1084 = vmatpush1.msra.mxu0 0.0
        %1085 = vmatprep.subr.mxu0 0.0
        %1086 = vmatpush1.msra.mxu0 %v661
        %1087 = vmatprep.subr.mxu0 0.0
        %1088 = vmatpush1.msra.mxu0 %v660
        %1089 = vmatprep.subr.mxu0 0.0
        %1090 = vmatpush1.msra.mxu0 %v659
        %1091 = vmatprep.subr.mxu0 0.0
        %1092 = vmatpush1.msra.mxu0 %v658
        %1093 = vmatprep.subr.mxu0 0.0
        %1094 = vmatpush2.msra.mxu0 0.0
        %1095 = vmatprep.subr.mxu0 0.0
        %1096 = vmatpush2.msra.mxu0 0.0
        %1097 = vmatprep.subr.mxu0 0.0
        %1098 = vmatpush2.msra.mxu0 0.0
        %1099 = vmatprep.subr.mxu0 0.0
        %1100 = vmatpush2.msra.mxu0 0.0
        %1101 = vmatprep.subr.mxu0 0.0
        %1102 = vmatpush2.msra.mxu0 0.0
        %1103 = vmatprep.subr.mxu0 0.0
        %1104 = vmatpush2.msra.mxu0 0.0
        %1105 = vmatprep.subr.mxu0 0.0
        %1106 = vmatpush2.msra.mxu0 0.0
        %1107 = vmatprep.subr.mxu0 0.0
        %1108 = vmatpush2.msra.mxu0 0.0
        %1109 = vmatprep.subr.mxu0 0.0
        %1110 = vmatpush2.msra.mxu0 0.0
        %1111 = vmatprep.subr.mxu0 0.0
        %1112 = vmatpush2.msra.mxu0 0.0
        %1113 = vmatprep.subr.mxu0 0.0
        %1114 = vmatpush2.msra.mxu0 0.0
        %1115 = vmatprep.subr.mxu0 0.0
        %1116 = vmatpush2.msra.mxu0 0.0
        %1117 = vmatprep.subr.mxu0 0.0
        %1118 = vmatpush2.msra.mxu0 0.0
        %1119 = vmatprep.subr.mxu0 0.0
        %1120 = vmatpush2.msra.mxu0 0.0
        %1121 = vmatprep.subr.mxu0 0.0
        %1122 = vmatpush2.msra.mxu0 0.0
        %1123 = vmatprep.subr.mxu0 0.0
        %1124 = vmatpush2.msra.mxu0 0.0
        %1125 = vmatprep.mubr.f32.mxu0 0.0
        %1126 = vmatmul.mubr.f32.gmra.mxu0 %v674
        %v1127 = vpop.f32.mrf.mxu0
        %v1128 = vadd.f32 %v896, %v1127
        %v1129 = vpop.f32.mrf.mxu0
        %1130 = vdwg.mxu0
        %v1131 = vld [vmem:[%s6 + $0x2] sm:$0x1]
        %v1132 = vlaneseq
        %v1133 = vshrl.u32 %v1132, 7
        %v1134 = vsub.s32 0, %v1133
        %v1135 = vrot.slane %v1131, %v1134
        %v1136 = vadd.f32 %v1128, %v1135
        %v1137 = vxor.u32 %v1136, 2147483648
        %v1138 = vmul.f32 %v1137, 1.442695
        %v1139 = vpow.pop %v1138
        %v1140 = vadd.f32 %v1139, 1.0
        %v1141 = vrcp.pop %v1140
        %v1142 = vmul.f32 1.0, %v1141
        %v1143 = vmul.f32 %v1060, %v976
        %v1144 = vadd.f32 %v743, %v1143
        %v1145 = vtanh.pop %v1144
        %v1146 = vsub.f32 1.0, %v1142
        %v1147 = vmul.f32 %v1146, %v1145
        %v1148 = vmul.f32 %v1142, %v491
        %v1149 = vadd.f32 %v1147, %v1148
        %1150 = vst.msk [vmem:[#allocation2] sm:$0xff] %vm672, %v1149
        %v1151 = vld [vmem:[#allocation14] sm:$0xff]
        %v1152 = vld [vmem:[#allocation14 + $0x8] sm:$0xff]
        %v1153 = vld [vmem:[#allocation14 + $0x10] sm:$0xff]
        %v1154 = vld [vmem:[#allocation14 + $0x18] sm:$0xff]
        %v1155 = vld [vmem:[%s6 + $0x5] sm:$0x1]
        %v1156 = vlaneseq
        %v1157 = vshrl.u32 %v1156, 7
        %v1158 = vsub.s32 0, %v1157
        %v1159 = vrot.slane %v1155, %v1158
        %v1161 = vsel %vm672, %v1149, 0
        %1163 = vmatprep.subr.mxu0 0.0
        %1164 = vmatpush1.msra.mxu0 0.0
        %1165 = vmatprep.subr.mxu0 0.0
        %1166 = vmatpush1.msra.mxu0 0.0
        %1167 = vmatprep.subr.mxu0 0.0
        %1168 = vmatpush1.msra.mxu0 0.0
        %1169 = vmatprep.subr.mxu0 0.0
        %1170 = vmatpush1.msra.mxu0 0.0
        %1171 = vmatprep.subr.mxu0 0.0
        %1172 = vmatpush1.msra.mxu0 0.0
        %1173 = vmatprep.subr.mxu0 0.0
        %1174 = vmatpush1.msra.mxu0 0.0
        %1175 = vmatprep.subr.mxu0 0.0
        %1176 = vmatpush1.msra.mxu0 0.0
        %1177 = vmatprep.subr.mxu0 0.0
        %1178 = vmatpush1.msra.mxu0 0.0
        %1179 = vmatprep.subr.mxu0 0.0
        %1180 = vmatpush1.msra.mxu0 0.0
        %1181 = vmatprep.subr.mxu0 0.0
        %1182 = vmatpush1.msra.mxu0 0.0
        %1183 = vmatprep.subr.mxu0 0.0
        %1184 = vmatpush1.msra.mxu0 0.0
        %1185 = vmatprep.subr.mxu0 0.0
        %1186 = vmatpush1.msra.mxu0 0.0
        %1187 = vmatprep.subr.mxu0 0.0
        %1188 = vmatpush1.msra.mxu0 %v1154
        %1189 = vmatprep.subr.mxu0 0.0
        %1190 = vmatpush1.msra.mxu0 %v1153
        %1191 = vmatprep.subr.mxu0 0.0
        %1192 = vmatpush1.msra.mxu0 %v1152
        %1193 = vmatprep.subr.mxu0 0.0
        %1194 = vmatpush1.msra.mxu0 %v1151
        %1195 = vmatprep.subr.mxu0 0.0
        %1196 = vmatpush2.msra.mxu0 0.0
        %1197 = vmatprep.subr.mxu0 0.0
        %1198 = vmatpush2.msra.mxu0 0.0
        %1199 = vmatprep.subr.mxu0 0.0
        %1200 = vmatpush2.msra.mxu0 0.0
        %1201 = vmatprep.subr.mxu0 0.0
        %1202 = vmatpush2.msra.mxu0 0.0
        %1203 = vmatprep.subr.mxu0 0.0
        %1204 = vmatpush2.msra.mxu0 0.0
        %1205 = vmatprep.subr.mxu0 0.0
        %1206 = vmatpush2.msra.mxu0 0.0
        %1207 = vmatprep.subr.mxu0 0.0
        %1208 = vmatpush2.msra.mxu0 0.0
        %1209 = vmatprep.subr.mxu0 0.0
        %1210 = vmatpush2.msra.mxu0 0.0
        %1211 = vmatprep.subr.mxu0 0.0
        %1212 = vmatpush2.msra.mxu0 0.0
        %1213 = vmatprep.subr.mxu0 0.0
        %1214 = vmatpush2.msra.mxu0 0.0
        %1215 = vmatprep.subr.mxu0 0.0
        %1216 = vmatpush2.msra.mxu0 0.0
        %1217 = vmatprep.subr.mxu0 0.0
        %1218 = vmatpush2.msra.mxu0 0.0
        %1219 = vmatprep.subr.mxu0 0.0
        %1220 = vmatpush2.msra.mxu0 0.0
        %1221 = vmatprep.subr.mxu0 0.0
        %1222 = vmatpush2.msra.mxu0 0.0
        %1223 = vmatprep.subr.mxu0 0.0
        %1224 = vmatpush2.msra.mxu0 0.0
        %1225 = vmatprep.subr.mxu0 0.0
        %1226 = vmatpush2.msra.mxu0 0.0
        %1227 = vmatprep.mubr.f32.mxu0 0.0
        %1228 = vmatmul.mubr.f32.gmra.mxu0 %v1161
        %v1229 = vpop.f32.mrf.mxu0
        %v1230 = vadd.f32 %v1159, %v1229
        %v1231 = vpop.f32.mrf.mxu0
        %1232 = vdwg.mxu0
        %1233 = vst.msk [vmem:[%s481] sm:$0xff] %vm672, %v1230
        %p1234 = scmp.eq.s32.totalorder %s38, 7
        // Predicated region
        $region85: #{tpu_custom_call.1} parent=51 // pred_check
          %p1235 = pneg %p1234
        $region86: #{tpu_custom_call.1} parent=51 // pred_check_branch
          %1237 = sbr.rel (%p1235) target = $region88
        $region87: #{tpu_custom_call.1} parent=51 // pred_region
          %1238 = vst.msk [vmem:[#allocation16] sm:$0xff] %vm672, %v1149
        $region88: #{tpu_custom_call.1} parent=51 // pred_fallthru
          _
        %s1239 = sand.u32 %s242, 1
        %s1240 = scalar_lea.sflag [#allocation5], %s1239
        %s1241 = sand.u32 %s242, 1
        %s1242 = smul.addr %s1241, 8
        %s1243 = scalar_lea.vmem [#allocation15], %s1242
        // Predicated region
        $region89: #{tpu_custom_call.1} parent=51 // pred_check
          %p1244 = pneg %p252
        $region90: #{tpu_custom_call.1} parent=51 // pred_check_branch
          %1246 = sbr.rel (%p1244) target = $region92
        $region91: #{tpu_custom_call.1} parent=51 // pred_region
          %s1248 = ssub.s32 128, 128
          %1249 = vsyncadd %s1240, %s1248
          %s1250 = sadd.s32 %s37, %s38
          %s1251 = smul.addr %s1250, 128
          %s1252 = scalar_lea.hbm %s8, %s1251
          %s1254 = sshll.u32 %s1243, 4
          %s1255 = int_to_ptr.vmem [resolvable:$true] %s1254
          %1257 = dma.vmem_to_hbm [thread:$0]  %s1255, 128, %s1252, %s1240
        $region92: #{tpu_custom_call.1} parent=51 // pred_fallthru
          _
        // Predicated region
        $region93: #{tpu_custom_call.1} parent=51 // pred_check
          %p1258 = pneg %p278
        $region94: #{tpu_custom_call.1} parent=51 // pred_check_branch
          %1260 = sbr.rel (%p1258) target = $region96
        $region95: #{tpu_custom_call.1} parent=51 // pred_region
          %s1262 = ssub.s32 128, 128
          %1263 = vsyncadd [#allocation17], %s1262
          %s1264 = smul.addr %s37, 128
          %s1265 = scalar_lea.hbm %s9, %s1264
          %s1267 = sshll.u32 [#allocation16], 4
          %s1268 = int_to_ptr.vmem [resolvable:$true] %s1267
          %1270 = dma.vmem_to_hbm [thread:$0]  %s1268, 128, %s1265, [#allocation17]
        $region96: #{tpu_custom_call.1} parent=51 // pred_fallthru
          _
        // Predicated region
        $region97: #{tpu_custom_call.1} parent=51 // pred_check
          %p1271 = pneg %p278
        $region98: #{tpu_custom_call.1} parent=51 // pred_check_branch
          %1273 = sbr.rel (%p1271) target = $region100
        $region99: #{tpu_custom_call.1} parent=51 // pred_region
          %1274 = dma.done [#allocation17], 128
        $region100: #{tpu_custom_call.1} parent=51 // pred_fallthru
          _
      $region52: #{tpu_custom_call.1} parent=5 // pred_fallthru
        _
      %p1275 = scmp.le.s32.totalorder 2, %s28
      // Predicated region
      $region101: #{tpu_custom_call.1} parent=5 // pred_check
        %p1276 = pneg %p1275
      $region102: #{tpu_custom_call.1} parent=5 // pred_check_branch
        %1278 = sbr.rel (%p1276) target = $region104
      $region103: #{tpu_custom_call.1} parent=5 // pred_region
        %s1279 = ssub.s32 %s28, 2
        // Predicated region
        $region105: #{tpu_custom_call.1} parent=103 // pred_check
          %p1280 = pneg %p258
        $region106: #{tpu_custom_call.1} parent=103 // pred_check_branch
          %1282 = sbr.rel (%p1280) target = $region108
        $region107: #{tpu_custom_call.1} parent=103 // pred_region
          %s1283 = sand.u32 %s243, 1
          %s1284 = scalar_lea.sflag [#allocation5], %s1283
          %s1285 = sand.u32 %s243, 1
          %s1286 = smul.addr %s1285, 8
          %s1287 = scalar_lea.vmem [#allocation15], %s1286
          %1288 = dma.done %s1284, 128
        $region108: #{tpu_custom_call.1} parent=103 // pred_fallthru
          _
      $region104: #{tpu_custom_call.1} parent=5 // pred_fallthru
        _
    $region6: #{tpu_custom_call.1} parent=1 // loop_footer
      %s32 = sadd.s32 1, %s28
    $region7: #{tpu_custom_call.1} parent=1 // loop_footer_branch
      %27 = sbr.rel target = $region3
    $region8: #{tpu_custom_call.1} parent=1 // loop_exit
      _
    %1289 = vsyncpa [#allocation4], 1
    %s1290 = scalar_lea.sflag [#allocation4], 1
    %1291 = vsyncpa %s1290, 1
    %1292 = vsyncpa [#allocation7], 1
    %s1293 = scalar_lea.sflag [#allocation7], 1
    %1294 = vsyncpa %s1293, 1
    %1295 = vsyncpa [#allocation10], 1
    %1296 = vsyncpa [#allocation13], 1
    %1297 = vsyncpa [#allocation5], 1
    %s1298 = scalar_lea.sflag [#allocation5], 1
    %1299 = vsyncpa %s1298, 1
    %1300 = vsyncpa [#allocation17], 1

</llo_original>
